<compile_context>
chip_gen: v7x
topology: tpu7x:2x2x1
jax: 0.10.0
libtpu: 0.0.40
codegen_flags: <defaults>
</compile_context>

<pallas_src>
import functools
import numpy as np

import jax
import jax.numpy as jnp
from jax import lax
from jax.experimental import pallas as pl
from jax.experimental.pallas import tpu as pltpu

_HI = lax.Precision.HIGHEST


# ----------------------------------------------------------------------------
# Pallas kernel: per-sample dynamic depthwise 3x3 conv (channel attention
# pre-folded into the weights) fused with the 1x1 conv (bias + inference BN
# pre-folded), NCHW, grid = (batch, H-tile).
# ----------------------------------------------------------------------------
def _odconv_block_kernel(x_ref, halo_ref, dw_ref, pw_ref, pwb_ref, o_ref, *,
                         apply_activation):
    b = pl.program_id(0)
    C, TH, W = x_ref.shape
    Cout = o_ref.shape[0]

    outs = [None] * Cout
    for c in range(C):
        xc = x_ref[c].astype(jnp.float32)                    # (TH, W)
        top = halo_ref[c, 0:1, :].astype(jnp.float32)        # image row above tile
        bot = halo_ref[c, 1:2, :].astype(jnp.float32)        # image row below tile

        # Row bands (kh = 0/1/2): only 2 sublane-shifted concatenations per
        # channel instead of 9 shifted tap loads.
        band0 = jnp.concatenate([top, xc[:TH - 1, :]], axis=0)    # rows h-1
        band1 = xc                                                 # rows h
        band2 = jnp.concatenate([xc[1:, :], bot], axis=0)         # rows h+1

        def w(kh, kw):
            return dw_ref[b, c * 9 + kh * 3 + kw]              # SMEM scalar

        # Per-kw column sums (9 scalar*array FMAs on the VPU).
        col0 = band0 * w(0, 0) + band1 * w(1, 0) + band2 * w(2, 0)
        col1 = band0 * w(0, 1) + band1 * w(1, 1) + band2 * w(2, 1)
        col2 = band0 * w(0, 2) + band1 * w(1, 2) + band2 * w(2, 2)

        # Column (lane) shifts with zero padding at the image border.
        zcol = jnp.zeros((TH, 1), jnp.float32)
        acc_c = (col1
                 + jnp.concatenate([zcol, col0[:, :W - 1]], axis=1)   # x[.., w-1]
                 + jnp.concatenate([col2[:, 1:], zcol], axis=1))      # x[.., w+1]

        # 1x1 conv (bias + BN folded) fused as per-channel scalar FMAs (VPU;
        # MXU skipped on purpose for tiny C/Cout).
        for co in range(Cout):
            t = acc_c * pw_ref[co, c]
            outs[co] = t if outs[co] is None else outs[co] + t

    for co in range(Cout):
        y = outs[co] + pwb_ref[co]
        if apply_activation:                    # Swish (conv_bn_act_pattern=True)
            y = y * jax.nn.sigmoid(y)
        o_ref[co, :, :] = y.astype(o_ref.dtype)


def _choose_th(H, W, C, Cout, budget_bytes):
    """Largest H-tile (divisor of H) whose pipelined f32 footprint fits budget."""
    divisors = [d for d in range(1, H + 1) if H % d == 0]
    # Block-shape constraint: second-minor block dim must be a multiple of 8 or
    # equal to the full dim; also need TH >= 2 for the row-band slices.
    candidates = [d for d in divisors if (d == H or d % 8 == 0) and d >= 2] or [H]
    per_row = 4 * W * (2 * C + 2 * Cout + (C + Cout + 6))   # dbl-buffered IO + temps
    best = candidates[0]
    for th in candidates:
        if th * per_row <= budget_bytes:
            best = th
    return best


def odconv_block_pallas(x_nchw, agg_dw, pw_w, pw_b, *, apply_activation=False,
                        tile_budget_bytes=8 * 1024 * 1024):
    """x_nchw: (B,C,H,W); agg_dw: (B,C,3,3) f32 (channel attention folded);
    pw_w: (Cout,C) f32 (BN scale folded); pw_b: (Cout,) f32 (bias+BN folded)."""
    B, C, H, W = x_nchw.shape
    Cout = pw_w.shape[0]
    TH = _choose_th(H, W, C, Cout, tile_budget_bytes)
    nH = H // TH

    # Two halo rows per H-tile (row above / row below, zeros at the image
    # border).  Replaces a full jnp.pad of the activation (no extra HBM pass).
    zrow = jnp.zeros((B, C, 1, W), x_nchw.dtype)
    if nH > 1:
        tops = jnp.concatenate(
            [zrow, x_nchw[:, :, TH - 1::TH, :][:, :, :nH - 1, :]], axis=2)
        bots = jnp.concatenate([x_nchw[:, :, TH::TH, :], zrow], axis=2)
    else:
        tops, bots = zrow, zrow
    halos = jnp.stack([tops, bots], axis=3)                  # (B, C, nH, 2, W)

    dw_flat = agg_dw.reshape(B, C * 9).astype(jnp.float32)   # SMEM scalar table

    kern = functools.partial(_odconv_block_kernel,
                             apply_activation=apply_activation)
    return pl.pallas_call(
        kern,
        out_shape=jax.ShapeDtypeStruct((B, Cout, H, W), x_nchw.dtype),
        grid=(B, nH),
        in_specs=[
            pl.BlockSpec((None, C, TH, W), lambda b, t: (b, 0, t, 0)),          # x tile
            pl.BlockSpec((None, C, None, 2, W), lambda b, t: (b, 0, t, 0, 0)),  # halos
            pl.BlockSpec(memory_space=pltpu.MemorySpace.SMEM),                  # dw (B, C*9)
            pl.BlockSpec(memory_space=pltpu.MemorySpace.SMEM),                  # pw (Cout, C)
            pl.BlockSpec(memory_space=pltpu.MemorySpace.SMEM),                  # pwb (Cout,)
        ],
        out_specs=pl.BlockSpec((None, Cout, TH, W), lambda b, t: (b, 0, t, 0)),
        compiler_params=pltpu.CompilerParams(
            dimension_semantics=("parallel", "parallel"),
            vmem_limit_bytes=64 * 1024 * 1024),
    )(x_nchw, halos, dw_flat, pw_w.astype(jnp.float32), pw_b.astype(jnp.float32))


# ----------------------------------------------------------------------------
# Parameters (deterministic synthetic init, shapes from the module __init__).
# ----------------------------------------------------------------------------
def init_params(key, C, Cout, kernel_num=4, reduction=0.0625, min_channel=16):
    A = max(int(C * reduction), min_channel)          # attention hidden width
    ks = jax.random.split(key, 18)
    n = lambda k, s, sc=0.1: (jax.random.normal(k, s) * sc).astype(jnp.float32)
    u = lambda k, s: jax.random.uniform(k, s, minval=0.5, maxval=1.5).astype(jnp.float32)
    return dict(
        att_fc_w=n(ks[0], (A, C)),                               # Attention.fc (no bias)
        att_bn_g=u(ks[1], (A,)), att_bn_b=n(ks[2], (A,)),        # Attention.bn
        att_bn_m=n(ks[3], (A,)), att_bn_v=u(ks[4], (A,)),
        ch_fc_w=n(ks[5], (C, A)), ch_fc_b=n(ks[6], (C,)),        # channel_fc
        sp_fc_w=n(ks[7], (9, A)), sp_fc_b=n(ks[8], (9,)),        # spatial_fc (3x3)
        k_fc_w=n(ks[9], (kernel_num, A)), k_fc_b=n(ks[10], (kernel_num,)),  # kernel_fc
        dw_weight=n(ks[11], (kernel_num, C, 1, 3, 3), 0.3),      # ODConv weight bank
        pw_w=n(ks[12], (Cout, C, 1, 1), 0.3), pw_b=n(ks[13], (Cout,)),      # pointwise
        bn_g=u(ks[14], (Cout,)), bn_b=n(ks[15], (Cout,)),        # output BN (eps=1e-3)
        bn_m=n(ks[16], (Cout,)), bn_v=u(ks[17], (Cout,)),
    )


# ----------------------------------------------------------------------------
# Full ODConvBlock forward.  Attention MLPs are tiny -> plain-JAX glue; the
# spatial hot path runs in the Pallas kernel above.  Channel attention and
# pointwise bias + inference BN are folded into the weights here (exact up to
# f32 rounding).
# ----------------------------------------------------------------------------
def odconv_block_forward(params, x_nchw, apply_activation=False):
    B, C, H, W = x_nchw.shape
    temperature = 1.0

    # --- ODConv attention branch (global avg pool + tiny MLPs, plain JAX) ---
    pooled = jnp.mean(x_nchw.astype(jnp.float32), axis=(2, 3))     # (B, C)
    h = jnp.dot(pooled, params["att_fc_w"].T, precision=_HI)       # (B, A)
    h = (h - params["att_bn_m"]) * lax.rsqrt(params["att_bn_v"] + 1e-5) \
        * params["att_bn_g"] + params["att_bn_b"]
    h = jax.nn.relu(h)
    ca = jax.nn.sigmoid((jnp.dot(h, params["ch_fc_w"].T, precision=_HI)
                         + params["ch_fc_b"]) / temperature)        # (B, C)
    sa = jax.nn.sigmoid((jnp.dot(h, params["sp_fc_w"].T, precision=_HI)
                         + params["sp_fc_b"]) / temperature).reshape(B, 3, 3)
    ka = jax.nn.softmax((jnp.dot(h, params["k_fc_w"].T, precision=_HI)
                         + params["k_fc_b"]) / temperature, axis=1)  # (B, K)
    # filter attention = 1 (skip) because in_planes == out_planes == groups.

    # Per-sample aggregated depthwise weights, channel attention folded in.
    wdw = params["dw_weight"][:, :, 0, :, :]                        # (K, C, 3, 3)
    agg = jnp.einsum("bk,bij,kcij->bcij", ka, sa, wdw, precision=_HI)
    agg = agg * ca[:, :, None, None]                                # (B, C, 3, 3)

    # Fold pointwise bias + inference BatchNorm (eps=1e-3 from norm_cfg) into
    # the 1x1 conv weights; keep them in f32.
    scale = params["bn_g"] * lax.rsqrt(params["bn_v"] + 1e-3)       # (Cout,)
    pw_w = params["pw_w"][:, :, 0, 0] * scale[:, None]              # (Cout, C)
    pw_b = (params["pw_b"] - params["bn_m"]) * scale + params["bn_b"]

    return odconv_block_pallas(x_nchw, agg, pw_w, pw_b,
                               apply_activation=apply_activation)


# ----------------------------------------------------------------------------
# Pure-JAX reference (mirrors the PyTorch NCHW graph) for validation.
# ----------------------------------------------------------------------------
def reference_forward(params, x_nchw):
    B, C, H, W = x_nchw.shape
    pooled = x_nchw.mean((2, 3))
    h = jnp.dot(pooled, params["att_fc_w"].T, precision=_HI)
    h = (h - params["att_bn_m"]) * lax.rsqrt(params["att_bn_v"] + 1e-5) \
        * params["att_bn_g"] + params["att_bn_b"]
    h = jax.nn.relu(h)
    ca = jax.nn.sigmoid(jnp.dot(h, params["ch_fc_w"].T, precision=_HI) + params["ch_fc_b"])
    sa = jax.nn.sigmoid(jnp.dot(h, params["sp_fc_w"].T, precision=_HI)
                        + params["sp_fc_b"]).reshape(B, 1, 1, 1, 3, 3)
    ka = jax.nn.softmax(jnp.dot(h, params["k_fc_w"].T, precision=_HI)
                        + params["k_fc_b"], axis=1).reshape(B, -1, 1, 1, 1, 1)

    x1 = (x_nchw * ca[:, :, None, None]).reshape(1, B * C, H, W)
    agg = (sa * ka * params["dw_weight"][None]).sum(1).reshape(B * C, 1, 3, 3)
    out = lax.conv_general_dilated(
        x1, agg, (1, 1), ((1, 1), (1, 1)),
        dimension_numbers=("NCHW", "OIHW", "NCHW"),
        feature_group_count=B * C, precision=_HI)
    out = out.reshape(B, C, H, W)                                   # * filter_attn (=1)

    out = jnp.einsum("bchw,oc->bohw", out, params["pw_w"][:, :, 0, 0],
                     precision=_HI) + params["pw_b"][None, :, None, None]
    out = (out - params["bn_m"][None, :, None, None]) \
        * lax.rsqrt(params["bn_v"] + 1e-3)[None, :, None, None] \
        * params["bn_g"][None, :, None, None] + params["bn_b"][None, :, None, None]
    return out


if __name__ == "__main__":
    key = jax.random.PRNGKey(0)
    kx, kp = jax.random.split(key)
    B, C, H, W, Cout = 2, 4, 16, 16, 8

    x_nchw = jax.random.normal(kx, (B, C, H, W), jnp.float32)
    params = init_params(kp, C, Cout)

    out = jax.block_until_ready(
        odconv_block_forward(params, x_nchw, apply_activation=False))

    ref = reference_forward(params, x_nchw)
    np.testing.assert_allclose(np.asarray(out), np.asarray(ref),
                               atol=1e-3, rtol=1e-3)
    print("KERNEL_OK")
</pallas_src>

<mosaic_0001>
module attributes {stable_mosaic.version = 11 : i64} {
  func.func @_odconv_block_kernel(%arg0: i32, %arg1: i32, %arg2: memref<1x4x16x16xf32, #tpu.memory_space<vmem>>, %arg3: memref<1x4x1x2x16xf32, #tpu.memory_space<vmem>>, %arg4: memref<2x36xf32, #tpu.memory_space<smem>>, %arg5: memref<8x4xf32, #tpu.memory_space<smem>>, %arg6: memref<8xf32, #tpu.memory_space<smem>>, %arg7: memref<1x8x16x16xf32, #tpu.memory_space<vmem>>) attributes {dimension_semantics = [#tpu.dimension_semantics<parallel>, #tpu.dimension_semantics<parallel>], iteration_bounds = array<i64: 2, 1>, scalar_prefetch = 0 : i64, scratch_operands = 0 : i64, tpu.core_type = #tpu.core_type<tc>, window_params = [{transform_indices = @transform_0, window_bounds = array<i64: 1, 4, 16, 16>}, {transform_indices = @transform_1, window_bounds = array<i64: 1, 4, 1, 2, 16>}, {transform_indices = @transform_2, window_bounds = array<i64: 2, 36>}, {transform_indices = @transform_3, window_bounds = array<i64: 8, 4>}, {transform_indices = @transform_4, window_bounds = array<i64: 8>}, {transform_indices = @transform_5, window_bounds = array<i64: 1, 8, 16, 16>}]} {
    %c0 = arith.constant 0 : index
    %c0_0 = arith.constant 0 : index
    %c0_1 = arith.constant 0 : index
    %c0_2 = arith.constant 0 : index
    %0 = vector.load %arg2[%c0, %c0_0, %c0_1, %c0_2] : memref<1x4x16x16xf32, #tpu.memory_space<vmem>>, vector<1x1x16x16xf32>
    %1 = vector.shape_cast %0 : vector<1x1x16x16xf32> to vector<16x16xf32>
    %c0_3 = arith.constant 0 : index
    %c0_4 = arith.constant 0 : index
    %c0_5 = arith.constant 0 : index
    %c0_6 = arith.constant 0 : index
    %c0_7 = arith.constant 0 : index
    %2 = vector.load %arg3[%c0_3, %c0_4, %c0_5, %c0_6, %c0_7] : memref<1x4x1x2x16xf32, #tpu.memory_space<vmem>>, vector<1x1x1x1x16xf32>
    %3 = vector.shape_cast %2 : vector<1x1x1x1x16xf32> to vector<1x16xf32>
    %c0_8 = arith.constant 0 : index
    %c0_9 = arith.constant 0 : index
    %c0_10 = arith.constant 0 : index
    %c1 = arith.constant 1 : index
    %c0_11 = arith.constant 0 : index
    %4 = vector.load %arg3[%c0_8, %c0_9, %c0_10, %c1, %c0_11] : memref<1x4x1x2x16xf32, #tpu.memory_space<vmem>>, vector<1x1x1x1x16xf32>
    %5 = vector.shape_cast %4 : vector<1x1x1x1x16xf32> to vector<1x16xf32>
    %6 = vector.extract_strided_slice %1 {offsets = [0, 0], sizes = [15, 16], strides = [1, 1]} : vector<16x16xf32> to vector<15x16xf32>
    %7 = tpu.concatenate %3, %6 in 0 : vector<1x16xf32>, vector<15x16xf32> -> vector<16x16xf32>
    %8 = vector.extract_strided_slice %1 {offsets = [1, 0], sizes = [15, 16], strides = [1, 1]} : vector<16x16xf32> to vector<15x16xf32>
    %9 = tpu.concatenate %8, %5 in 0 : vector<15x16xf32>, vector<1x16xf32> -> vector<16x16xf32>
    %10 = arith.index_cast %arg0 : i32 to index
    %c0_12 = arith.constant 0 : index
    %11 = memref.load %arg4[%10, %c0_12] : memref<2x36xf32, #tpu.memory_space<smem>>
    %12 = vector.broadcast %11 : f32 to vector<16x16xf32>
    %13 = arith.mulf %7, %12 : vector<16x16xf32>
    %14 = arith.index_cast %arg0 : i32 to index
    %c3 = arith.constant 3 : index
    %15 = memref.load %arg4[%14, %c3] : memref<2x36xf32, #tpu.memory_space<smem>>
    %16 = vector.broadcast %15 : f32 to vector<16x16xf32>
    %17 = arith.mulf %1, %16 : vector<16x16xf32>
    %18 = arith.addf %13, %17 : vector<16x16xf32>
    %19 = arith.index_cast %arg0 : i32 to index
    %c6 = arith.constant 6 : index
    %20 = memref.load %arg4[%19, %c6] : memref<2x36xf32, #tpu.memory_space<smem>>
    %21 = vector.broadcast %20 : f32 to vector<16x16xf32>
    %22 = arith.mulf %9, %21 : vector<16x16xf32>
    %23 = arith.addf %18, %22 : vector<16x16xf32>
    %24 = arith.index_cast %arg0 : i32 to index
    %c1_13 = arith.constant 1 : index
    %25 = memref.load %arg4[%24, %c1_13] : memref<2x36xf32, #tpu.memory_space<smem>>
    %26 = vector.broadcast %25 : f32 to vector<16x16xf32>
    %27 = arith.mulf %7, %26 : vector<16x16xf32>
    %28 = arith.index_cast %arg0 : i32 to index
    %c4 = arith.constant 4 : index
    %29 = memref.load %arg4[%28, %c4] : memref<2x36xf32, #tpu.memory_space<smem>>
    %30 = vector.broadcast %29 : f32 to vector<16x16xf32>
    %31 = arith.mulf %1, %30 : vector<16x16xf32>
    %32 = arith.addf %27, %31 : vector<16x16xf32>
    %33 = arith.index_cast %arg0 : i32 to index
    %c7 = arith.constant 7 : index
    %34 = memref.load %arg4[%33, %c7] : memref<2x36xf32, #tpu.memory_space<smem>>
    %35 = vector.broadcast %34 : f32 to vector<16x16xf32>
    %36 = arith.mulf %9, %35 : vector<16x16xf32>
    %37 = arith.addf %32, %36 : vector<16x16xf32>
    %38 = arith.index_cast %arg0 : i32 to index
    %c2 = arith.constant 2 : index
    %39 = memref.load %arg4[%38, %c2] : memref<2x36xf32, #tpu.memory_space<smem>>
    %40 = vector.broadcast %39 : f32 to vector<16x16xf32>
    %41 = arith.mulf %7, %40 : vector<16x16xf32>
    %42 = arith.index_cast %arg0 : i32 to index
    %c5 = arith.constant 5 : index
    %43 = memref.load %arg4[%42, %c5] : memref<2x36xf32, #tpu.memory_space<smem>>
    %44 = vector.broadcast %43 : f32 to vector<16x16xf32>
    %45 = arith.mulf %1, %44 : vector<16x16xf32>
    %46 = arith.addf %41, %45 : vector<16x16xf32>
    %47 = arith.index_cast %arg0 : i32 to index
    %c8 = arith.constant 8 : index
    %48 = memref.load %arg4[%47, %c8] : memref<2x36xf32, #tpu.memory_space<smem>>
    %49 = vector.broadcast %48 : f32 to vector<16x16xf32>
    %50 = arith.mulf %9, %49 : vector<16x16xf32>
    %51 = arith.addf %46, %50 : vector<16x16xf32>
    %cst = arith.constant 0.000000e+00 : f32
    %52 = vector.broadcast %cst : f32 to vector<16x1xf32>
    %53 = vector.extract_strided_slice %23 {offsets = [0, 0], sizes = [16, 15], strides = [1, 1]} : vector<16x16xf32> to vector<16x15xf32>
    %54 = tpu.concatenate %52, %53 in 1 : vector<16x1xf32>, vector<16x15xf32> -> vector<16x16xf32>
    %55 = arith.addf %37, %54 : vector<16x16xf32>
    %56 = vector.extract_strided_slice %51 {offsets = [0, 1], sizes = [16, 15], strides = [1, 1]} : vector<16x16xf32> to vector<16x15xf32>
    %57 = tpu.concatenate %56, %52 in 1 : vector<16x15xf32>, vector<16x1xf32> -> vector<16x16xf32>
    %58 = arith.addf %55, %57 : vector<16x16xf32>
    %c0_14 = arith.constant 0 : index
    %c0_15 = arith.constant 0 : index
    %59 = memref.load %arg5[%c0_14, %c0_15] : memref<8x4xf32, #tpu.memory_space<smem>>
    %60 = vector.broadcast %59 : f32 to vector<16x16xf32>
    %61 = arith.mulf %58, %60 : vector<16x16xf32>
    %c1_16 = arith.constant 1 : index
    %c0_17 = arith.constant 0 : index
    %62 = memref.load %arg5[%c1_16, %c0_17] : memref<8x4xf32, #tpu.memory_space<smem>>
    %63 = vector.broadcast %62 : f32 to vector<16x16xf32>
    %64 = arith.mulf %58, %63 : vector<16x16xf32>
    %c2_18 = arith.constant 2 : index
    %c0_19 = arith.constant 0 : index
    %65 = memref.load %arg5[%c2_18, %c0_19] : memref<8x4xf32, #tpu.memory_space<smem>>
    %66 = vector.broadcast %65 : f32 to vector<16x16xf32>
    %67 = arith.mulf %58, %66 : vector<16x16xf32>
    %c3_20 = arith.constant 3 : index
    %c0_21 = arith.constant 0 : index
    %68 = memref.load %arg5[%c3_20, %c0_21] : memref<8x4xf32, #tpu.memory_space<smem>>
    %69 = vector.broadcast %68 : f32 to vector<16x16xf32>
    %70 = arith.mulf %58, %69 : vector<16x16xf32>
    %c4_22 = arith.constant 4 : index
    %c0_23 = arith.constant 0 : index
    %71 = memref.load %arg5[%c4_22, %c0_23] : memref<8x4xf32, #tpu.memory_space<smem>>
    %72 = vector.broadcast %71 : f32 to vector<16x16xf32>
    %73 = arith.mulf %58, %72 : vector<16x16xf32>
    %c5_24 = arith.constant 5 : index
    %c0_25 = arith.constant 0 : index
    %74 = memref.load %arg5[%c5_24, %c0_25] : memref<8x4xf32, #tpu.memory_space<smem>>
    %75 = vector.broadcast %74 : f32 to vector<16x16xf32>
    %76 = arith.mulf %58, %75 : vector<16x16xf32>
    %c6_26 = arith.constant 6 : index
    %c0_27 = arith.constant 0 : index
    %77 = memref.load %arg5[%c6_26, %c0_27] : memref<8x4xf32, #tpu.memory_space<smem>>
    %78 = vector.broadcast %77 : f32 to vector<16x16xf32>
    %79 = arith.mulf %58, %78 : vector<16x16xf32>
    %c7_28 = arith.constant 7 : index
    %c0_29 = arith.constant 0 : index
    %80 = memref.load %arg5[%c7_28, %c0_29] : memref<8x4xf32, #tpu.memory_space<smem>>
    %81 = vector.broadcast %80 : f32 to vector<16x16xf32>
    %82 = arith.mulf %58, %81 : vector<16x16xf32>
    %c0_30 = arith.constant 0 : index
    %c1_31 = arith.constant 1 : index
    %c0_32 = arith.constant 0 : index
    %c0_33 = arith.constant 0 : index
    %83 = vector.load %arg2[%c0_30, %c1_31, %c0_32, %c0_33] : memref<1x4x16x16xf32, #tpu.memory_space<vmem>>, vector<1x1x16x16xf32>
    %84 = vector.shape_cast %83 : vector<1x1x16x16xf32> to vector<16x16xf32>
    %c0_34 = arith.constant 0 : index
    %c1_35 = arith.constant 1 : index
    %c0_36 = arith.constant 0 : index
    %c0_37 = arith.constant 0 : index
    %c0_38 = arith.constant 0 : index
    %85 = vector.load %arg3[%c0_34, %c1_35, %c0_36, %c0_37, %c0_38] : memref<1x4x1x2x16xf32, #tpu.memory_space<vmem>>, vector<1x1x1x1x16xf32>
    %86 = vector.shape_cast %85 : vector<1x1x1x1x16xf32> to vector<1x16xf32>
    %c0_39 = arith.constant 0 : index
    %c1_40 = arith.constant 1 : index
    %c0_41 = arith.constant 0 : index
    %c1_42 = arith.constant 1 : index
    %c0_43 = arith.constant 0 : index
    %87 = vector.load %arg3[%c0_39, %c1_40, %c0_41, %c1_42, %c0_43] : memref<1x4x1x2x16xf32, #tpu.memory_space<vmem>>, vector<1x1x1x1x16xf32>
    %88 = vector.shape_cast %87 : vector<1x1x1x1x16xf32> to vector<1x16xf32>
    %89 = vector.extract_strided_slice %84 {offsets = [0, 0], sizes = [15, 16], strides = [1, 1]} : vector<16x16xf32> to vector<15x16xf32>
    %90 = tpu.concatenate %86, %89 in 0 : vector<1x16xf32>, vector<15x16xf32> -> vector<16x16xf32>
    %91 = vector.extract_strided_slice %84 {offsets = [1, 0], sizes = [15, 16], strides = [1, 1]} : vector<16x16xf32> to vector<15x16xf32>
    %92 = tpu.concatenate %91, %88 in 0 : vector<15x16xf32>, vector<1x16xf32> -> vector<16x16xf32>
    %93 = arith.index_cast %arg0 : i32 to index
    %c9 = arith.constant 9 : index
    %94 = memref.load %arg4[%93, %c9] : memref<2x36xf32, #tpu.memory_space<smem>>
    %95 = vector.broadcast %94 : f32 to vector<16x16xf32>
    %96 = arith.mulf %90, %95 : vector<16x16xf32>
    %97 = arith.index_cast %arg0 : i32 to index
    %c12 = arith.constant 12 : index
    %98 = memref.load %arg4[%97, %c12] : memref<2x36xf32, #tpu.memory_space<smem>>
    %99 = vector.broadcast %98 : f32 to vector<16x16xf32>
    %100 = arith.mulf %84, %99 : vector<16x16xf32>
    %101 = arith.addf %96, %100 : vector<16x16xf32>
    %102 = arith.index_cast %arg0 : i32 to index
    %c15 = arith.constant 15 : index
    %103 = memref.load %arg4[%102, %c15] : memref<2x36xf32, #tpu.memory_space<smem>>
    %104 = vector.broadcast %103 : f32 to vector<16x16xf32>
    %105 = arith.mulf %92, %104 : vector<16x16xf32>
    %106 = arith.addf %101, %105 : vector<16x16xf32>
    %107 = arith.index_cast %arg0 : i32 to index
    %c10 = arith.constant 10 : index
    %108 = memref.load %arg4[%107, %c10] : memref<2x36xf32, #tpu.memory_space<smem>>
    %109 = vector.broadcast %108 : f32 to vector<16x16xf32>
    %110 = arith.mulf %90, %109 : vector<16x16xf32>
    %111 = arith.index_cast %arg0 : i32 to index
    %c13 = arith.constant 13 : index
    %112 = memref.load %arg4[%111, %c13] : memref<2x36xf32, #tpu.memory_space<smem>>
    %113 = vector.broadcast %112 : f32 to vector<16x16xf32>
    %114 = arith.mulf %84, %113 : vector<16x16xf32>
    %115 = arith.addf %110, %114 : vector<16x16xf32>
    %116 = arith.index_cast %arg0 : i32 to index
    %c16 = arith.constant 16 : index
    %117 = memref.load %arg4[%116, %c16] : memref<2x36xf32, #tpu.memory_space<smem>>
    %118 = vector.broadcast %117 : f32 to vector<16x16xf32>
    %119 = arith.mulf %92, %118 : vector<16x16xf32>
    %120 = arith.addf %115, %119 : vector<16x16xf32>
    %121 = arith.index_cast %arg0 : i32 to index
    %c11 = arith.constant 11 : index
    %122 = memref.load %arg4[%121, %c11] : memref<2x36xf32, #tpu.memory_space<smem>>
    %123 = vector.broadcast %122 : f32 to vector<16x16xf32>
    %124 = arith.mulf %90, %123 : vector<16x16xf32>
    %125 = arith.index_cast %arg0 : i32 to index
    %c14 = arith.constant 14 : index
    %126 = memref.load %arg4[%125, %c14] : memref<2x36xf32, #tpu.memory_space<smem>>
    %127 = vector.broadcast %126 : f32 to vector<16x16xf32>
    %128 = arith.mulf %84, %127 : vector<16x16xf32>
    %129 = arith.addf %124, %128 : vector<16x16xf32>
    %130 = arith.index_cast %arg0 : i32 to index
    %c17 = arith.constant 17 : index
    %131 = memref.load %arg4[%130, %c17] : memref<2x36xf32, #tpu.memory_space<smem>>
    %132 = vector.broadcast %131 : f32 to vector<16x16xf32>
    %133 = arith.mulf %92, %132 : vector<16x16xf32>
    %134 = arith.addf %129, %133 : vector<16x16xf32>
    %cst_44 = arith.constant 0.000000e+00 : f32
    %135 = vector.broadcast %cst_44 : f32 to vector<16x1xf32>
    %136 = vector.extract_strided_slice %106 {offsets = [0, 0], sizes = [16, 15], strides = [1, 1]} : vector<16x16xf32> to vector<16x15xf32>
    %137 = tpu.concatenate %135, %136 in 1 : vector<16x1xf32>, vector<16x15xf32> -> vector<16x16xf32>
    %138 = arith.addf %120, %137 : vector<16x16xf32>
    %139 = vector.extract_strided_slice %134 {offsets = [0, 1], sizes = [16, 15], strides = [1, 1]} : vector<16x16xf32> to vector<16x15xf32>
    %140 = tpu.concatenate %139, %135 in 1 : vector<16x15xf32>, vector<16x1xf32> -> vector<16x16xf32>
    %141 = arith.addf %138, %140 : vector<16x16xf32>
    %c0_45 = arith.constant 0 : index
    %c1_46 = arith.constant 1 : index
    %142 = memref.load %arg5[%c0_45, %c1_46] : memref<8x4xf32, #tpu.memory_space<smem>>
    %143 = vector.broadcast %142 : f32 to vector<16x16xf32>
    %144 = arith.mulf %141, %143 : vector<16x16xf32>
    %145 = arith.addf %61, %144 : vector<16x16xf32>
    %c1_47 = arith.constant 1 : index
    %c1_48 = arith.constant 1 : index
    %146 = memref.load %arg5[%c1_47, %c1_48] : memref<8x4xf32, #tpu.memory_space<smem>>
    %147 = vector.broadcast %146 : f32 to vector<16x16xf32>
    %148 = arith.mulf %141, %147 : vector<16x16xf32>
    %149 = arith.addf %64, %148 : vector<16x16xf32>
    %c2_49 = arith.constant 2 : index
    %c1_50 = arith.constant 1 : index
    %150 = memref.load %arg5[%c2_49, %c1_50] : memref<8x4xf32, #tpu.memory_space<smem>>
    %151 = vector.broadcast %150 : f32 to vector<16x16xf32>
    %152 = arith.mulf %141, %151 : vector<16x16xf32>
    %153 = arith.addf %67, %152 : vector<16x16xf32>
    %c3_51 = arith.constant 3 : index
    %c1_52 = arith.constant 1 : index
    %154 = memref.load %arg5[%c3_51, %c1_52] : memref<8x4xf32, #tpu.memory_space<smem>>
    %155 = vector.broadcast %154 : f32 to vector<16x16xf32>
    %156 = arith.mulf %141, %155 : vector<16x16xf32>
    %157 = arith.addf %70, %156 : vector<16x16xf32>
    %c4_53 = arith.constant 4 : index
    %c1_54 = arith.constant 1 : index
    %158 = memref.load %arg5[%c4_53, %c1_54] : memref<8x4xf32, #tpu.memory_space<smem>>
    %159 = vector.broadcast %158 : f32 to vector<16x16xf32>
    %160 = arith.mulf %141, %159 : vector<16x16xf32>
    %161 = arith.addf %73, %160 : vector<16x16xf32>
    %c5_55 = arith.constant 5 : index
    %c1_56 = arith.constant 1 : index
    %162 = memref.load %arg5[%c5_55, %c1_56] : memref<8x4xf32, #tpu.memory_space<smem>>
    %163 = vector.broadcast %162 : f32 to vector<16x16xf32>
    %164 = arith.mulf %141, %163 : vector<16x16xf32>
    %165 = arith.addf %76, %164 : vector<16x16xf32>
    %c6_57 = arith.constant 6 : index
    %c1_58 = arith.constant 1 : index
    %166 = memref.load %arg5[%c6_57, %c1_58] : memref<8x4xf32, #tpu.memory_space<smem>>
    %167 = vector.broadcast %166 : f32 to vector<16x16xf32>
    %168 = arith.mulf %141, %167 : vector<16x16xf32>
    %169 = arith.addf %79, %168 : vector<16x16xf32>
    %c7_59 = arith.constant 7 : index
    %c1_60 = arith.constant 1 : index
    %170 = memref.load %arg5[%c7_59, %c1_60] : memref<8x4xf32, #tpu.memory_space<smem>>
    %171 = vector.broadcast %170 : f32 to vector<16x16xf32>
    %172 = arith.mulf %141, %171 : vector<16x16xf32>
    %173 = arith.addf %82, %172 : vector<16x16xf32>
    %c0_61 = arith.constant 0 : index
    %c2_62 = arith.constant 2 : index
    %c0_63 = arith.constant 0 : index
    %c0_64 = arith.constant 0 : index
    %174 = vector.load %arg2[%c0_61, %c2_62, %c0_63, %c0_64] : memref<1x4x16x16xf32, #tpu.memory_space<vmem>>, vector<1x1x16x16xf32>
    %175 = vector.shape_cast %174 : vector<1x1x16x16xf32> to vector<16x16xf32>
    %c0_65 = arith.constant 0 : index
    %c2_66 = arith.constant 2 : index
    %c0_67 = arith.constant 0 : index
    %c0_68 = arith.constant 0 : index
    %c0_69 = arith.constant 0 : index
    %176 = vector.load %arg3[%c0_65, %c2_66, %c0_67, %c0_68, %c0_69] : memref<1x4x1x2x16xf32, #tpu.memory_space<vmem>>, vector<1x1x1x1x16xf32>
    %177 = vector.shape_cast %176 : vector<1x1x1x1x16xf32> to vector<1x16xf32>
    %c0_70 = arith.constant 0 : index
    %c2_71 = arith.constant 2 : index
    %c0_72 = arith.constant 0 : index
    %c1_73 = arith.constant 1 : index
    %c0_74 = arith.constant 0 : index
    %178 = vector.load %arg3[%c0_70, %c2_71, %c0_72, %c1_73, %c0_74] : memref<1x4x1x2x16xf32, #tpu.memory_space<vmem>>, vector<1x1x1x1x16xf32>
    %179 = vector.shape_cast %178 : vector<1x1x1x1x16xf32> to vector<1x16xf32>
    %180 = vector.extract_strided_slice %175 {offsets = [0, 0], sizes = [15, 16], strides = [1, 1]} : vector<16x16xf32> to vector<15x16xf32>
    %181 = tpu.concatenate %177, %180 in 0 : vector<1x16xf32>, vector<15x16xf32> -> vector<16x16xf32>
    %182 = vector.extract_strided_slice %175 {offsets = [1, 0], sizes = [15, 16], strides = [1, 1]} : vector<16x16xf32> to vector<15x16xf32>
    %183 = tpu.concatenate %182, %179 in 0 : vector<15x16xf32>, vector<1x16xf32> -> vector<16x16xf32>
    %184 = arith.index_cast %arg0 : i32 to index
    %c18 = arith.constant 18 : index
    %185 = memref.load %arg4[%184, %c18] : memref<2x36xf32, #tpu.memory_space<smem>>
    %186 = vector.broadcast %185 : f32 to vector<16x16xf32>
    %187 = arith.mulf %181, %186 : vector<16x16xf32>
    %188 = arith.index_cast %arg0 : i32 to index
    %c21 = arith.constant 21 : index
    %189 = memref.load %arg4[%188, %c21] : memref<2x36xf32, #tpu.memory_space<smem>>
    %190 = vector.broadcast %189 : f32 to vector<16x16xf32>
    %191 = arith.mulf %175, %190 : vector<16x16xf32>
    %192 = arith.addf %187, %191 : vector<16x16xf32>
    %193 = arith.index_cast %arg0 : i32 to index
    %c24 = arith.constant 24 : index
    %194 = memref.load %arg4[%193, %c24] : memref<2x36xf32, #tpu.memory_space<smem>>
    %195 = vector.broadcast %194 : f32 to vector<16x16xf32>
    %196 = arith.mulf %183, %195 : vector<16x16xf32>
    %197 = arith.addf %192, %196 : vector<16x16xf32>
    %198 = arith.index_cast %arg0 : i32 to index
    %c19 = arith.constant 19 : index
    %199 = memref.load %arg4[%198, %c19] : memref<2x36xf32, #tpu.memory_space<smem>>
    %200 = vector.broadcast %199 : f32 to vector<16x16xf32>
    %201 = arith.mulf %181, %200 : vector<16x16xf32>
    %202 = arith.index_cast %arg0 : i32 to index
    %c22 = arith.constant 22 : index
    %203 = memref.load %arg4[%202, %c22] : memref<2x36xf32, #tpu.memory_space<smem>>
    %204 = vector.broadcast %203 : f32 to vector<16x16xf32>
    %205 = arith.mulf %175, %204 : vector<16x16xf32>
    %206 = arith.addf %201, %205 : vector<16x16xf32>
    %207 = arith.index_cast %arg0 : i32 to index
    %c25 = arith.constant 25 : index
    %208 = memref.load %arg4[%207, %c25] : memref<2x36xf32, #tpu.memory_space<smem>>
    %209 = vector.broadcast %208 : f32 to vector<16x16xf32>
    %210 = arith.mulf %183, %209 : vector<16x16xf32>
    %211 = arith.addf %206, %210 : vector<16x16xf32>
    %212 = arith.index_cast %arg0 : i32 to index
    %c20 = arith.constant 20 : index
    %213 = memref.load %arg4[%212, %c20] : memref<2x36xf32, #tpu.memory_space<smem>>
    %214 = vector.broadcast %213 : f32 to vector<16x16xf32>
    %215 = arith.mulf %181, %214 : vector<16x16xf32>
    %216 = arith.index_cast %arg0 : i32 to index
    %c23 = arith.constant 23 : index
    %217 = memref.load %arg4[%216, %c23] : memref<2x36xf32, #tpu.memory_space<smem>>
    %218 = vector.broadcast %217 : f32 to vector<16x16xf32>
    %219 = arith.mulf %175, %218 : vector<16x16xf32>
    %220 = arith.addf %215, %219 : vector<16x16xf32>
    %221 = arith.index_cast %arg0 : i32 to index
    %c26 = arith.constant 26 : index
    %222 = memref.load %arg4[%221, %c26] : memref<2x36xf32, #tpu.memory_space<smem>>
    %223 = vector.broadcast %222 : f32 to vector<16x16xf32>
    %224 = arith.mulf %183, %223 : vector<16x16xf32>
    %225 = arith.addf %220, %224 : vector<16x16xf32>
    %cst_75 = arith.constant 0.000000e+00 : f32
    %226 = vector.broadcast %cst_75 : f32 to vector<16x1xf32>
    %227 = vector.extract_strided_slice %197 {offsets = [0, 0], sizes = [16, 15], strides = [1, 1]} : vector<16x16xf32> to vector<16x15xf32>
    %228 = tpu.concatenate %226, %227 in 1 : vector<16x1xf32>, vector<16x15xf32> -> vector<16x16xf32>
    %229 = arith.addf %211, %228 : vector<16x16xf32>
    %230 = vector.extract_strided_slice %225 {offsets = [0, 1], sizes = [16, 15], strides = [1, 1]} : vector<16x16xf32> to vector<16x15xf32>
    %231 = tpu.concatenate %230, %226 in 1 : vector<16x15xf32>, vector<16x1xf32> -> vector<16x16xf32>
    %232 = arith.addf %229, %231 : vector<16x16xf32>
    %c0_76 = arith.constant 0 : index
    %c2_77 = arith.constant 2 : index
    %233 = memref.load %arg5[%c0_76, %c2_77] : memref<8x4xf32, #tpu.memory_space<smem>>
    %234 = vector.broadcast %233 : f32 to vector<16x16xf32>
    %235 = arith.mulf %232, %234 : vector<16x16xf32>
    %236 = arith.addf %145, %235 : vector<16x16xf32>
    %c1_78 = arith.constant 1 : index
    %c2_79 = arith.constant 2 : index
    %237 = memref.load %arg5[%c1_78, %c2_79] : memref<8x4xf32, #tpu.memory_space<smem>>
    %238 = vector.broadcast %237 : f32 to vector<16x16xf32>
    %239 = arith.mulf %232, %238 : vector<16x16xf32>
    %240 = arith.addf %149, %239 : vector<16x16xf32>
    %c2_80 = arith.constant 2 : index
    %c2_81 = arith.constant 2 : index
    %241 = memref.load %arg5[%c2_80, %c2_81] : memref<8x4xf32, #tpu.memory_space<smem>>
    %242 = vector.broadcast %241 : f32 to vector<16x16xf32>
    %243 = arith.mulf %232, %242 : vector<16x16xf32>
    %244 = arith.addf %153, %243 : vector<16x16xf32>
    %c3_82 = arith.constant 3 : index
    %c2_83 = arith.constant 2 : index
    %245 = memref.load %arg5[%c3_82, %c2_83] : memref<8x4xf32, #tpu.memory_space<smem>>
    %246 = vector.broadcast %245 : f32 to vector<16x16xf32>
    %247 = arith.mulf %232, %246 : vector<16x16xf32>
    %248 = arith.addf %157, %247 : vector<16x16xf32>
    %c4_84 = arith.constant 4 : index
    %c2_85 = arith.constant 2 : index
    %249 = memref.load %arg5[%c4_84, %c2_85] : memref<8x4xf32, #tpu.memory_space<smem>>
    %250 = vector.broadcast %249 : f32 to vector<16x16xf32>
    %251 = arith.mulf %232, %250 : vector<16x16xf32>
    %252 = arith.addf %161, %251 : vector<16x16xf32>
    %c5_86 = arith.constant 5 : index
    %c2_87 = arith.constant 2 : index
    %253 = memref.load %arg5[%c5_86, %c2_87] : memref<8x4xf32, #tpu.memory_space<smem>>
    %254 = vector.broadcast %253 : f32 to vector<16x16xf32>
    %255 = arith.mulf %232, %254 : vector<16x16xf32>
    %256 = arith.addf %165, %255 : vector<16x16xf32>
    %c6_88 = arith.constant 6 : index
    %c2_89 = arith.constant 2 : index
    %257 = memref.load %arg5[%c6_88, %c2_89] : memref<8x4xf32, #tpu.memory_space<smem>>
    %258 = vector.broadcast %257 : f32 to vector<16x16xf32>
    %259 = arith.mulf %232, %258 : vector<16x16xf32>
    %260 = arith.addf %169, %259 : vector<16x16xf32>
    %c7_90 = arith.constant 7 : index
    %c2_91 = arith.constant 2 : index
    %261 = memref.load %arg5[%c7_90, %c2_91] : memref<8x4xf32, #tpu.memory_space<smem>>
    %262 = vector.broadcast %261 : f32 to vector<16x16xf32>
    %263 = arith.mulf %232, %262 : vector<16x16xf32>
    %264 = arith.addf %173, %263 : vector<16x16xf32>
    %c0_92 = arith.constant 0 : index
    %c3_93 = arith.constant 3 : index
    %c0_94 = arith.constant 0 : index
    %c0_95 = arith.constant 0 : index
    %265 = vector.load %arg2[%c0_92, %c3_93, %c0_94, %c0_95] : memref<1x4x16x16xf32, #tpu.memory_space<vmem>>, vector<1x1x16x16xf32>
    %266 = vector.shape_cast %265 : vector<1x1x16x16xf32> to vector<16x16xf32>
    %c0_96 = arith.constant 0 : index
    %c3_97 = arith.constant 3 : index
    %c0_98 = arith.constant 0 : index
    %c0_99 = arith.constant 0 : index
    %c0_100 = arith.constant 0 : index
    %267 = vector.load %arg3[%c0_96, %c3_97, %c0_98, %c0_99, %c0_100] : memref<1x4x1x2x16xf32, #tpu.memory_space<vmem>>, vector<1x1x1x1x16xf32>
    %268 = vector.shape_cast %267 : vector<1x1x1x1x16xf32> to vector<1x16xf32>
    %c0_101 = arith.constant 0 : index
    %c3_102 = arith.constant 3 : index
    %c0_103 = arith.constant 0 : index
    %c1_104 = arith.constant 1 : index
    %c0_105 = arith.constant 0 : index
    %269 = vector.load %arg3[%c0_101, %c3_102, %c0_103, %c1_104, %c0_105] : memref<1x4x1x2x16xf32, #tpu.memory_space<vmem>>, vector<1x1x1x1x16xf32>
    %270 = vector.shape_cast %269 : vector<1x1x1x1x16xf32> to vector<1x16xf32>
    %271 = vector.extract_strided_slice %266 {offsets = [0, 0], sizes = [15, 16], strides = [1, 1]} : vector<16x16xf32> to vector<15x16xf32>
    %272 = tpu.concatenate %268, %271 in 0 : vector<1x16xf32>, vector<15x16xf32> -> vector<16x16xf32>
    %273 = vector.extract_strided_slice %266 {offsets = [1, 0], sizes = [15, 16], strides = [1, 1]} : vector<16x16xf32> to vector<15x16xf32>
    %274 = tpu.concatenate %273, %270 in 0 : vector<15x16xf32>, vector<1x16xf32> -> vector<16x16xf32>
    %275 = arith.index_cast %arg0 : i32 to index
    %c27 = arith.constant 27 : index
    %276 = memref.load %arg4[%275, %c27] : memref<2x36xf32, #tpu.memory_space<smem>>
    %277 = vector.broadcast %276 : f32 to vector<16x16xf32>
    %278 = arith.mulf %272, %277 : vector<16x16xf32>
    %279 = arith.index_cast %arg0 : i32 to index
    %c30 = arith.constant 30 : index
    %280 = memref.load %arg4[%279, %c30] : memref<2x36xf32, #tpu.memory_space<smem>>
    %281 = vector.broadcast %280 : f32 to vector<16x16xf32>
    %282 = arith.mulf %266, %281 : vector<16x16xf32>
    %283 = arith.addf %278, %282 : vector<16x16xf32>
    %284 = arith.index_cast %arg0 : i32 to index
    %c33 = arith.constant 33 : index
    %285 = memref.load %arg4[%284, %c33] : memref<2x36xf32, #tpu.memory_space<smem>>
    %286 = vector.broadcast %285 : f32 to vector<16x16xf32>
    %287 = arith.mulf %274, %286 : vector<16x16xf32>
    %288 = arith.addf %283, %287 : vector<16x16xf32>
    %289 = arith.index_cast %arg0 : i32 to index
    %c28 = arith.constant 28 : index
    %290 = memref.load %arg4[%289, %c28] : memref<2x36xf32, #tpu.memory_space<smem>>
    %291 = vector.broadcast %290 : f32 to vector<16x16xf32>
    %292 = arith.mulf %272, %291 : vector<16x16xf32>
    %293 = arith.index_cast %arg0 : i32 to index
    %c31 = arith.constant 31 : index
    %294 = memref.load %arg4[%293, %c31] : memref<2x36xf32, #tpu.memory_space<smem>>
    %295 = vector.broadcast %294 : f32 to vector<16x16xf32>
    %296 = arith.mulf %266, %295 : vector<16x16xf32>
    %297 = arith.addf %292, %296 : vector<16x16xf32>
    %298 = arith.index_cast %arg0 : i32 to index
    %c34 = arith.constant 34 : index
    %299 = memref.load %arg4[%298, %c34] : memref<2x36xf32, #tpu.memory_space<smem>>
    %300 = vector.broadcast %299 : f32 to vector<16x16xf32>
    %301 = arith.mulf %274, %300 : vector<16x16xf32>
    %302 = arith.addf %297, %301 : vector<16x16xf32>
    %303 = arith.index_cast %arg0 : i32 to index
    %c29 = arith.constant 29 : index
    %304 = memref.load %arg4[%303, %c29] : memref<2x36xf32, #tpu.memory_space<smem>>
    %305 = vector.broadcast %304 : f32 to vector<16x16xf32>
    %306 = arith.mulf %272, %305 : vector<16x16xf32>
    %307 = arith.index_cast %arg0 : i32 to index
    %c32 = arith.constant 32 : index
    %308 = memref.load %arg4[%307, %c32] : memref<2x36xf32, #tpu.memory_space<smem>>
    %309 = vector.broadcast %308 : f32 to vector<16x16xf32>
    %310 = arith.mulf %266, %309 : vector<16x16xf32>
    %311 = arith.addf %306, %310 : vector<16x16xf32>
    %312 = arith.index_cast %arg0 : i32 to index
    %c35 = arith.constant 35 : index
    %313 = memref.load %arg4[%312, %c35] : memref<2x36xf32, #tpu.memory_space<smem>>
    %314 = vector.broadcast %313 : f32 to vector<16x16xf32>
    %315 = arith.mulf %274, %314 : vector<16x16xf32>
    %316 = arith.addf %311, %315 : vector<16x16xf32>
    %cst_106 = arith.constant 0.000000e+00 : f32
    %317 = vector.broadcast %cst_106 : f32 to vector<16x1xf32>
    %318 = vector.extract_strided_slice %288 {offsets = [0, 0], sizes = [16, 15], strides = [1, 1]} : vector<16x16xf32> to vector<16x15xf32>
    %319 = tpu.concatenate %317, %318 in 1 : vector<16x1xf32>, vector<16x15xf32> -> vector<16x16xf32>
    %320 = arith.addf %302, %319 : vector<16x16xf32>
    %321 = vector.extract_strided_slice %316 {offsets = [0, 1], sizes = [16, 15], strides = [1, 1]} : vector<16x16xf32> to vector<16x15xf32>
    %322 = tpu.concatenate %321, %317 in 1 : vector<16x15xf32>, vector<16x1xf32> -> vector<16x16xf32>
    %323 = arith.addf %320, %322 : vector<16x16xf32>
    %c0_107 = arith.constant 0 : index
    %c3_108 = arith.constant 3 : index
    %324 = memref.load %arg5[%c0_107, %c3_108] : memref<8x4xf32, #tpu.memory_space<smem>>
    %325 = vector.broadcast %324 : f32 to vector<16x16xf32>
    %326 = arith.mulf %323, %325 : vector<16x16xf32>
    %327 = arith.addf %236, %326 : vector<16x16xf32>
    %c1_109 = arith.constant 1 : index
    %c3_110 = arith.constant 3 : index
    %328 = memref.load %arg5[%c1_109, %c3_110] : memref<8x4xf32, #tpu.memory_space<smem>>
    %329 = vector.broadcast %328 : f32 to vector<16x16xf32>
    %330 = arith.mulf %323, %329 : vector<16x16xf32>
    %331 = arith.addf %240, %330 : vector<16x16xf32>
    %c2_111 = arith.constant 2 : index
    %c3_112 = arith.constant 3 : index
    %332 = memref.load %arg5[%c2_111, %c3_112] : memref<8x4xf32, #tpu.memory_space<smem>>
    %333 = vector.broadcast %332 : f32 to vector<16x16xf32>
    %334 = arith.mulf %323, %333 : vector<16x16xf32>
    %335 = arith.addf %244, %334 : vector<16x16xf32>
    %c3_113 = arith.constant 3 : index
    %c3_114 = arith.constant 3 : index
    %336 = memref.load %arg5[%c3_113, %c3_114] : memref<8x4xf32, #tpu.memory_space<smem>>
    %337 = vector.broadcast %336 : f32 to vector<16x16xf32>
    %338 = arith.mulf %323, %337 : vector<16x16xf32>
    %339 = arith.addf %248, %338 : vector<16x16xf32>
    %c4_115 = arith.constant 4 : index
    %c3_116 = arith.constant 3 : index
    %340 = memref.load %arg5[%c4_115, %c3_116] : memref<8x4xf32, #tpu.memory_space<smem>>
    %341 = vector.broadcast %340 : f32 to vector<16x16xf32>
    %342 = arith.mulf %323, %341 : vector<16x16xf32>
    %343 = arith.addf %252, %342 : vector<16x16xf32>
    %c5_117 = arith.constant 5 : index
    %c3_118 = arith.constant 3 : index
    %344 = memref.load %arg5[%c5_117, %c3_118] : memref<8x4xf32, #tpu.memory_space<smem>>
    %345 = vector.broadcast %344 : f32 to vector<16x16xf32>
    %346 = arith.mulf %323, %345 : vector<16x16xf32>
    %347 = arith.addf %256, %346 : vector<16x16xf32>
    %c6_119 = arith.constant 6 : index
    %c3_120 = arith.constant 3 : index
    %348 = memref.load %arg5[%c6_119, %c3_120] : memref<8x4xf32, #tpu.memory_space<smem>>
    %349 = vector.broadcast %348 : f32 to vector<16x16xf32>
    %350 = arith.mulf %323, %349 : vector<16x16xf32>
    %351 = arith.addf %260, %350 : vector<16x16xf32>
    %c7_121 = arith.constant 7 : index
    %c3_122 = arith.constant 3 : index
    %352 = memref.load %arg5[%c7_121, %c3_122] : memref<8x4xf32, #tpu.memory_space<smem>>
    %353 = vector.broadcast %352 : f32 to vector<16x16xf32>
    %354 = arith.mulf %323, %353 : vector<16x16xf32>
    %355 = arith.addf %264, %354 : vector<16x16xf32>
    %c0_123 = arith.constant 0 : index
    %356 = memref.load %arg6[%c0_123] : memref<8xf32, #tpu.memory_space<smem>>
    %357 = vector.broadcast %356 : f32 to vector<16x16xf32>
    %358 = arith.addf %327, %357 : vector<16x16xf32>
    %c0_124 = arith.constant 0 : index
    %c0_125 = arith.constant 0 : index
    %c0_126 = arith.constant 0 : index
    %c0_127 = arith.constant 0 : index
    %359 = vector.load %arg7[%c0_124, %c0_125, %c0_126, %c0_127] : memref<1x8x16x16xf32, #tpu.memory_space<vmem>>, vector<1x1x16x16xf32>
    %360 = vector.shape_cast %359 : vector<1x1x16x16xf32> to vector<16x16xf32>
    %361 = vector.shape_cast %358 : vector<16x16xf32> to vector<1x1x16x16xf32>
    tpu.vector_store %arg7[%c0_124, %c0_125, %c0_126, %c0_127], %361 {strides = array<i32>} : memref<1x8x16x16xf32, #tpu.memory_space<vmem>>, vector<1x1x16x16xf32>,
    %c1_128 = arith.constant 1 : index
    %362 = memref.load %arg6[%c1_128] : memref<8xf32, #tpu.memory_space<smem>>
    %363 = vector.broadcast %362 : f32 to vector<16x16xf32>
    %364 = arith.addf %331, %363 : vector<16x16xf32>
    %c0_129 = arith.constant 0 : index
    %c1_130 = arith.constant 1 : index
    %c0_131 = arith.constant 0 : index
    %c0_132 = arith.constant 0 : index
    %365 = vector.load %arg7[%c0_129, %c1_130, %c0_131, %c0_132] : memref<1x8x16x16xf32, #tpu.memory_space<vmem>>, vector<1x1x16x16xf32>
    %366 = vector.shape_cast %365 : vector<1x1x16x16xf32> to vector<16x16xf32>
    %367 = vector.shape_cast %364 : vector<16x16xf32> to vector<1x1x16x16xf32>
    tpu.vector_store %arg7[%c0_129, %c1_130, %c0_131, %c0_132], %367 {strides = array<i32>} : memref<1x8x16x16xf32, #tpu.memory_space<vmem>>, vector<1x1x16x16xf32>,
    %c2_133 = arith.constant 2 : index
    %368 = memref.load %arg6[%c2_133] : memref<8xf32, #tpu.memory_space<smem>>
    %369 = vector.broadcast %368 : f32 to vector<16x16xf32>
    %370 = arith.addf %335, %369 : vector<16x16xf32>
    %c0_134 = arith.constant 0 : index
    %c2_135 = arith.constant 2 : index
    %c0_136 = arith.constant 0 : index
    %c0_137 = arith.constant 0 : index
    %371 = vector.load %arg7[%c0_134, %c2_135, %c0_136, %c0_137] : memref<1x8x16x16xf32, #tpu.memory_space<vmem>>, vector<1x1x16x16xf32>
    %372 = vector.shape_cast %371 : vector<1x1x16x16xf32> to vector<16x16xf32>
    %373 = vector.shape_cast %370 : vector<16x16xf32> to vector<1x1x16x16xf32>
    tpu.vector_store %arg7[%c0_134, %c2_135, %c0_136, %c0_137], %373 {strides = array<i32>} : memref<1x8x16x16xf32, #tpu.memory_space<vmem>>, vector<1x1x16x16xf32>,
    %c3_138 = arith.constant 3 : index
    %374 = memref.load %arg6[%c3_138] : memref<8xf32, #tpu.memory_space<smem>>
    %375 = vector.broadcast %374 : f32 to vector<16x16xf32>
    %376 = arith.addf %339, %375 : vector<16x16xf32>
    %c0_139 = arith.constant 0 : index
    %c3_140 = arith.constant 3 : index
    %c0_141 = arith.constant 0 : index
    %c0_142 = arith.constant 0 : index
    %377 = vector.load %arg7[%c0_139, %c3_140, %c0_141, %c0_142] : memref<1x8x16x16xf32, #tpu.memory_space<vmem>>, vector<1x1x16x16xf32>
    %378 = vector.shape_cast %377 : vector<1x1x16x16xf32> to vector<16x16xf32>
    %379 = vector.shape_cast %376 : vector<16x16xf32> to vector<1x1x16x16xf32>
    tpu.vector_store %arg7[%c0_139, %c3_140, %c0_141, %c0_142], %379 {strides = array<i32>} : memref<1x8x16x16xf32, #tpu.memory_space<vmem>>, vector<1x1x16x16xf32>,
    %c4_143 = arith.constant 4 : index
    %380 = memref.load %arg6[%c4_143] : memref<8xf32, #tpu.memory_space<smem>>
    %381 = vector.broadcast %380 : f32 to vector<16x16xf32>
    %382 = arith.addf %343, %381 : vector<16x16xf32>
    %c0_144 = arith.constant 0 : index
    %c4_145 = arith.constant 4 : index
    %c0_146 = arith.constant 0 : index
    %c0_147 = arith.constant 0 : index
    %383 = vector.load %arg7[%c0_144, %c4_145, %c0_146, %c0_147] : memref<1x8x16x16xf32, #tpu.memory_space<vmem>>, vector<1x1x16x16xf32>
    %384 = vector.shape_cast %383 : vector<1x1x16x16xf32> to vector<16x16xf32>
    %385 = vector.shape_cast %382 : vector<16x16xf32> to vector<1x1x16x16xf32>
    tpu.vector_store %arg7[%c0_144, %c4_145, %c0_146, %c0_147], %385 {strides = array<i32>} : memref<1x8x16x16xf32, #tpu.memory_space<vmem>>, vector<1x1x16x16xf32>,
    %c5_148 = arith.constant 5 : index
    %386 = memref.load %arg6[%c5_148] : memref<8xf32, #tpu.memory_space<smem>>
    %387 = vector.broadcast %386 : f32 to vector<16x16xf32>
    %388 = arith.addf %347, %387 : vector<16x16xf32>
    %c0_149 = arith.constant 0 : index
    %c5_150 = arith.constant 5 : index
    %c0_151 = arith.constant 0 : index
    %c0_152 = arith.constant 0 : index
    %389 = vector.load %arg7[%c0_149, %c5_150, %c0_151, %c0_152] : memref<1x8x16x16xf32, #tpu.memory_space<vmem>>, vector<1x1x16x16xf32>
    %390 = vector.shape_cast %389 : vector<1x1x16x16xf32> to vector<16x16xf32>
    %391 = vector.shape_cast %388 : vector<16x16xf32> to vector<1x1x16x16xf32>
    tpu.vector_store %arg7[%c0_149, %c5_150, %c0_151, %c0_152], %391 {strides = array<i32>} : memref<1x8x16x16xf32, #tpu.memory_space<vmem>>, vector<1x1x16x16xf32>,
    %c6_153 = arith.constant 6 : index
    %392 = memref.load %arg6[%c6_153] : memref<8xf32, #tpu.memory_space<smem>>
    %393 = vector.broadcast %392 : f32 to vector<16x16xf32>
    %394 = arith.addf %351, %393 : vector<16x16xf32>
    %c0_154 = arith.constant 0 : index
    %c6_155 = arith.constant 6 : index
    %c0_156 = arith.constant 0 : index
    %c0_157 = arith.constant 0 : index
    %395 = vector.load %arg7[%c0_154, %c6_155, %c0_156, %c0_157] : memref<1x8x16x16xf32, #tpu.memory_space<vmem>>, vector<1x1x16x16xf32>
    %396 = vector.shape_cast %395 : vector<1x1x16x16xf32> to vector<16x16xf32>
    %397 = vector.shape_cast %394 : vector<16x16xf32> to vector<1x1x16x16xf32>
    tpu.vector_store %arg7[%c0_154, %c6_155, %c0_156, %c0_157], %397 {strides = array<i32>} : memref<1x8x16x16xf32, #tpu.memory_space<vmem>>, vector<1x1x16x16xf32>,
    %c7_158 = arith.constant 7 : index
    %398 = memref.load %arg6[%c7_158] : memref<8xf32, #tpu.memory_space<smem>>
    %399 = vector.broadcast %398 : f32 to vector<16x16xf32>
    %400 = arith.addf %355, %399 : vector<16x16xf32>
    %c0_159 = arith.constant 0 : index
    %c7_160 = arith.constant 7 : index
    %c0_161 = arith.constant 0 : index
    %c0_162 = arith.constant 0 : index
    %401 = vector.load %arg7[%c0_159, %c7_160, %c0_161, %c0_162] : memref<1x8x16x16xf32, #tpu.memory_space<vmem>>, vector<1x1x16x16xf32>
    %402 = vector.shape_cast %401 : vector<1x1x16x16xf32> to vector<16x16xf32>
    %403 = vector.shape_cast %400 : vector<16x16xf32> to vector<1x1x16x16xf32>
    tpu.vector_store %arg7[%c0_159, %c7_160, %c0_161, %c0_162], %403 {strides = array<i32>} : memref<1x8x16x16xf32, #tpu.memory_space<vmem>>, vector<1x1x16x16xf32>,
    return
  }
  func.func @transform_0(%arg0: i32, %arg1: i32) -> (i32, i32, i32, i32) {
    %c0_i32 = arith.constant 0 : i32
    %c0_i32_0 = arith.constant 0 : i32
    %c0_i32_1 = arith.constant 0 : i32
    return %arg0, %c0_i32, %arg1, %c0_i32_0 : i32, i32, i32, i32
  }
  func.func @transform_1(%arg0: i32, %arg1: i32) -> (i32, i32, i32, i32, i32) {
    %c0_i32 = arith.constant 0 : i32
    %c0_i32_0 = arith.constant 0 : i32
    %c0_i32_1 = arith.constant 0 : i32
    %c0_i32_2 = arith.constant 0 : i32
    return %arg0, %c0_i32, %arg1, %c0_i32_0, %c0_i32_1 : i32, i32, i32, i32, i32
  }
  func.func @transform_2(%arg0: i32, %arg1: i32) -> (i32, i32) {
    %c0_i32 = arith.constant 0 : i32
    %c0_i32_0 = arith.constant 0 : i32
    %c0_i32_1 = arith.constant 0 : i32
    return %c0_i32, %c0_i32_0 : i32, i32
  }
  func.func @transform_3(%arg0: i32, %arg1: i32) -> (i32, i32) {
    %c0_i32 = arith.constant 0 : i32
    %c0_i32_0 = arith.constant 0 : i32
    %c0_i32_1 = arith.constant 0 : i32
    return %c0_i32, %c0_i32_0 : i32, i32
  }
  func.func @transform_4(%arg0: i32, %arg1: i32) -> i32 {
    %c0_i32 = arith.constant 0 : i32
    %c0_i32_0 = arith.constant 0 : i32
    return %c0_i32 : i32
  }
  func.func @transform_5(%arg0: i32, %arg1: i32) -> (i32, i32, i32, i32) {
    %c0_i32 = arith.constant 0 : i32
    %c0_i32_0 = arith.constant 0 : i32
    %c0_i32_1 = arith.constant 0 : i32
    return %arg0, %c0_i32, %arg1, %c0_i32_0 : i32, i32, i32, i32
  }
}

</mosaic_0001>

<llo_original>
// kernel: tpu_custom_call.1
$region0: #{tpu_custom_call.1}
  #allocation0 [shape = 'u32[]', space=smem, size = 0x4, offset = 0x4, fixed_abs, tag = 'smem constant byte address 0x4 - core index']
  #allocation1 [shape = 'u32[144,128]{1,0:T(1,128)}', space=vmem, size = 0x12000, scoped, tag = 'internal scratch']
  %s0 = inlined_call_operand.hbm [shape: f32[2,4,16,16], index: 0, kind: input, shape index: {}]
  %s1 = inlined_call_operand.hbm [shape: f32[2,4,1,2,16], index: 1, kind: input, shape index: {}]
  %s2 = inlined_call_operand.hbm [shape: f32[2,36], index: 2, kind: input, shape index: {}]
  %s3 = inlined_call_operand.hbm [shape: f32[8,4], index: 3, kind: input, shape index: {}]
  %s4 = inlined_call_operand.hbm [shape: f32[8], index: 4, kind: input, shape index: {}]
  %s5 = inlined_call_operand.hbm [shape: f32[2,8,16,16], index: 5, kind: output, shape index: {}]
  %s6 = sld [smem:[#allocation0]]
  $region73: #{tpu_custom_call.1} parent=0
    _
  %s8 = ssub.s32 1, %s6
  %s9 = scalar_select 0, %s8, %s6
  $region1: #{tpu_custom_call.1} parent=0
    #allocation2 [shape = 'u8[65536]{0}', space=vmem, size = 0x10000, scoped, tag = 'input window, operand 0']
    #allocation3 [shape = 's32[2]{0}', space=sflag, size = 0x8, scoped, tag = 'scoped memory for tpu_custom_call.1']
    #allocation4 [shape = 's32[2]{0}', space=sflag, size = 0x8, scoped, tag = 'scoped memory for tpu_custom_call.1']
    #allocation5 [shape = 's32[2]{0}', space=sflag, size = 0x8, scoped, tag = 'scoped memory for tpu_custom_call.1']
    #allocation6 [shape = 'u8[8192]{0}', space=vmem, size = 0x2000, scoped, tag = 'input window, operand 1']
    #allocation7 [shape = 's32[2]{0}', space=sflag, size = 0x8, scoped, tag = 'scoped memory for tpu_custom_call.1']
    #allocation8 [shape = 'u8[1024]{0}', space=smem, size = 0x400, scoped, tag = 'input window, operand 2, single buffered']
    #allocation9 [shape = 'u8[4096]{0}', space=smem, size = 0x1000, scoped, tag = 'input window, operand 3, single buffered']
    #allocation10 [shape = 's32[1]{0}', space=sflag, size = 0x4, scoped, tag = 'scoped memory for tpu_custom_call.1']
    #allocation11 [shape = 'u8[512]{0}', space=smem, size = 0x200, scoped, tag = 'input window, operand 4, single buffered']
    #allocation12 [shape = 'u8[131072]{0}', space=vmem, size = 0x20000, scoped, tag = 'output window, operand 0']
    %10 = vsyncpa [#allocation3], 0
    %s11 = scalar_lea.sflag [#allocation3], 1
    %12 = vsyncpa %s11, 0
    %13 = vsyncpa [#allocation7], 0
    %s14 = scalar_lea.sflag [#allocation7], 1
    %15 = vsyncpa %s14, 0
    %16 = vsyncpa [#allocation5], 0
    %17 = vsyncpa [#allocation10], 0
    %18 = vsyncpa [#allocation4], 0
    %s19 = scalar_lea.sflag [#allocation4], 1
    %20 = vsyncpa %s19, 0
    loop: start=0, step=1, limit=4
    $region2: #{tpu_custom_call.1} parent=1 // loop_pre_header
      _
    $region3: #{tpu_custom_call.1} parent=1 // loop_header
      %s22 = sphi 0, %s26
      %p23 = scmp.ge.s32.totalorder %s22, 4
      %s29 = sphi 0, %s41
      %s30 = sphi 0, %s37
      %s31 = sphi 0, %s29
      %s32 = sphi 0, %s30
      %s33 = sphi 0, %s31
      %s34 = sphi 0, %s32
      %s46 = sphi 0, %s48
      %s49 = sphi 0, %s46
      %s50 = sphi 0, %s49
      %s66 = sphi 0, %s50
      %s74 = sphi 0, %s76
      %s77 = sphi 0, %s74
      %s78 = sphi 0, %s77
      %s94 = sphi 0, %s78
      %s98 = sphi 0, %s98
      %s100 = sphi 0, %s98
      %s101 = sphi 0, %s100
      %s115 = sphi 0, %s101
      %s119 = sphi 0, %s119
      %s121 = sphi 0, %s119
      %s122 = sphi 0, %s121
      %s136 = sphi 0, %s122
      %s140 = sphi 0, %s140
      %s142 = sphi 0, %s140
      %s143 = sphi 0, %s142
      %s157 = sphi 0, %s143
      %s165 = sphi 0, %s167
      %s168 = sphi 0, %s165
      %s169 = sphi 0, %s168
      %s185 = sphi 0, %s169
    $region4: #{tpu_custom_call.1} parent=1 // loop_header_branch
      %25 = sbr.rel (%p23) target = $region8
    $region5: #{tpu_custom_call.1} parent=1 // loop_body
      %s27 = ssub.s32 %s22, 1
      %s28 = ssub.s32 %s22, 2
      %s35 = sadd.s32 1, %s30
      %p36 = scmp.ge.s32.totalorder %s35, 1
      %s37 = scalar_select %p36, 0, %s35
      %s38 = sadd.s32 1, %s29
      %s39 = scalar_select %p36, %s38, %s29
      %p40 = scmp.ge.s32.totalorder %s39, 2
      %s41 = scalar_select %p40, 0, %s39
      %s42 = ssub.s32 %s29, %s41
      %s43 = ssub.s32 %s30, %s37
      %s44 = sor.u32 %s42, %s43
      %p45 = scmp.eq.s32.totalorder %s44, 0
      %s47 = sadd.s32 %s46, 1
      %s48 = scalar_select %p45, %s46, %s47
      %p51 = pneg %p45
      %p52 = scmp.eq.s32.totalorder %s22, 1
      %p53 = por %p51, %p52
      %p54 = scmp.ne.s32.totalorder %s46, %s49
      %p55 = scmp.eq.s32.totalorder %s22, 0
      %p56 = por %p54, %p55
      %p57 = scmp.ne.s32.totalorder %s46, %s49
      %p58 = scmp.eq.s32.totalorder %s27, 1
      %p59 = por %p57, %p58
      %p60 = scmp.ne.s32.totalorder %s49, %s50
      %p61 = scmp.eq.s32.totalorder %s27, 0
      %p62 = por %p60, %p61
      %p63 = scmp.ne.s32.totalorder %s49, %s50
      %p64 = scmp.eq.s32.totalorder %s28, 1
      %p65 = por %p63, %p64
      %p67 = scmp.ne.s32.totalorder %s50, %s66
      %p68 = scmp.eq.s32.totalorder %s28, 0
      %p69 = por %p67, %p68
      %s70 = ssub.s32 %s29, %s41
      %s71 = ssub.s32 %s30, %s37
      %s72 = sor.u32 %s70, %s71
      %p73 = scmp.eq.s32.totalorder %s72, 0
      %s75 = sadd.s32 %s74, 1
      %s76 = scalar_select %p73, %s74, %s75
      %p79 = pneg %p73
      %p80 = scmp.eq.s32.totalorder %s22, 1
      %p81 = por %p79, %p80
      %p82 = scmp.ne.s32.totalorder %s74, %s77
      %p83 = scmp.eq.s32.totalorder %s22, 0
      %p84 = por %p82, %p83
      %p85 = scmp.ne.s32.totalorder %s74, %s77
      %p86 = scmp.eq.s32.totalorder %s27, 1
      %p87 = por %p85, %p86
      %p88 = scmp.ne.s32.totalorder %s77, %s78
      %p89 = scmp.eq.s32.totalorder %s27, 0
      %p90 = por %p88, %p89
      %p91 = scmp.ne.s32.totalorder %s77, %s78
      %p92 = scmp.eq.s32.totalorder %s28, 1
      %p93 = por %p91, %p92
      %p95 = scmp.ne.s32.totalorder %s78, %s94
      %p96 = scmp.eq.s32.totalorder %s28, 0
      %p97 = por %p95, %p96
      %s99 = sadd.s32 %s98, 1
      %p102 = scmp.eq.s32.totalorder %s22, 1
      %p103 = scmp.ne.s32.totalorder %s98, %s100
      %p104 = scmp.eq.s32.totalorder %s22, 0
      %p105 = por %p103, %p104
      %p106 = scmp.ne.s32.totalorder %s98, %s100
      %p107 = scmp.eq.s32.totalorder %s27, 1
      %p108 = por %p106, %p107
      %p109 = scmp.ne.s32.totalorder %s100, %s101
      %p110 = scmp.eq.s32.totalorder %s27, 0
      %p111 = por %p109, %p110
      %p112 = scmp.ne.s32.totalorder %s100, %s101
      %p113 = scmp.eq.s32.totalorder %s28, 1
      %p114 = por %p112, %p113
      %p116 = scmp.ne.s32.totalorder %s101, %s115
      %p117 = scmp.eq.s32.totalorder %s28, 0
      %p118 = por %p116, %p117
      %s120 = sadd.s32 %s119, 1
      %p123 = scmp.eq.s32.totalorder %s22, 1
      %p124 = scmp.ne.s32.totalorder %s119, %s121
      %p125 = scmp.eq.s32.totalorder %s22, 0
      %p126 = por %p124, %p125
      %p127 = scmp.ne.s32.totalorder %s119, %s121
      %p128 = scmp.eq.s32.totalorder %s27, 1
      %p129 = por %p127, %p128
      %p130 = scmp.ne.s32.totalorder %s121, %s122
      %p131 = scmp.eq.s32.totalorder %s27, 0
      %p132 = por %p130, %p131
      %p133 = scmp.ne.s32.totalorder %s121, %s122
      %p134 = scmp.eq.s32.totalorder %s28, 1
      %p135 = por %p133, %p134
      %p137 = scmp.ne.s32.totalorder %s122, %s136
      %p138 = scmp.eq.s32.totalorder %s28, 0
      %p139 = por %p137, %p138
      %s141 = sadd.s32 %s140, 1
      %p144 = scmp.eq.s32.totalorder %s22, 1
      %p145 = scmp.ne.s32.totalorder %s140, %s142
      %p146 = scmp.eq.s32.totalorder %s22, 0
      %p147 = por %p145, %p146
      %p148 = scmp.ne.s32.totalorder %s140, %s142
      %p149 = scmp.eq.s32.totalorder %s27, 1
      %p150 = por %p148, %p149
      %p151 = scmp.ne.s32.totalorder %s142, %s143
      %p152 = scmp.eq.s32.totalorder %s27, 0
      %p153 = por %p151, %p152
      %p154 = scmp.ne.s32.totalorder %s142, %s143
      %p155 = scmp.eq.s32.totalorder %s28, 1
      %p156 = por %p154, %p155
      %p158 = scmp.ne.s32.totalorder %s143, %s157
      %p159 = scmp.eq.s32.totalorder %s28, 0
      %p160 = por %p158, %p159
      %s161 = ssub.s32 %s29, %s41
      %s162 = ssub.s32 %s30, %s37
      %s163 = sor.u32 %s161, %s162
      %p164 = scmp.eq.s32.totalorder %s163, 0
      %s166 = sadd.s32 %s165, 1
      %s167 = scalar_select %p164, %s165, %s166
      %p170 = pneg %p164
      %p171 = scmp.eq.s32.totalorder %s22, 1
      %p172 = por %p170, %p171
      %p173 = scmp.ne.s32.totalorder %s165, %s168
      %p174 = scmp.eq.s32.totalorder %s22, 0
      %p175 = por %p173, %p174
      %p176 = scmp.ne.s32.totalorder %s165, %s168
      %p177 = scmp.eq.s32.totalorder %s27, 1
      %p178 = por %p176, %p177
      %p179 = scmp.ne.s32.totalorder %s168, %s169
      %p180 = scmp.eq.s32.totalorder %s27, 0
      %p181 = por %p179, %p180
      %p182 = scmp.ne.s32.totalorder %s168, %s169
      %p183 = scmp.eq.s32.totalorder %s28, 1
      %p184 = por %p182, %p183
      %p186 = scmp.ne.s32.totalorder %s169, %s185
      %p187 = scmp.eq.s32.totalorder %s28, 0
      %p188 = por %p186, %p187
      %p189 = scmp.le.s32.totalorder 1, %s22
      %p190 = scmp.lt.s32.totalorder %s22, 3
      %p191 = pnand %p189, %p190
      %p192 = pneg %p191
      // Predicated region
      $region9: #{tpu_custom_call.1} parent=5 // pred_check
        _
      $region10: #{tpu_custom_call.1} parent=5 // pred_check_branch
        %194 = sbr.rel (%p191) target = $region12
      $region11: #{tpu_custom_call.1} parent=5 // pred_region
        %s195 = ssub.s32 %s22, 1
        // Predicated region
        $region13: #{tpu_custom_call.1} parent=11 // pred_check
          %p196 = pneg %p111
        $region14: #{tpu_custom_call.1} parent=11 // pred_check_branch
          %198 = sbr.rel (%p196) target = $region16
        $region15: #{tpu_custom_call.1} parent=11 // pred_region
          %s200 = ssub.s32 32, 32
          %201 = vsyncadd [#allocation5], %s200
          %204 = dma.hbm_to_smem %s2, 32, [#allocation8], [#allocation5]
        $region16: #{tpu_custom_call.1} parent=11 // pred_fallthru
          _
        // Predicated region
        $region17: #{tpu_custom_call.1} parent=11 // pred_check
          %p205 = pneg %p132
        $region18: #{tpu_custom_call.1} parent=11 // pred_check_branch
          %207 = sbr.rel (%p205) target = $region20
        $region19: #{tpu_custom_call.1} parent=11 // pred_region
          %s209 = ssub.s32 128, 128
          %210 = vsyncadd [#allocation10], %s209
          %213 = dma.hbm_to_smem %s3, 128, [#allocation9], [#allocation10]
        $region20: #{tpu_custom_call.1} parent=11 // pred_fallthru
          _
        // Predicated region
        $region21: #{tpu_custom_call.1} parent=11 // pred_check
          %p214 = pneg %p153
        $region22: #{tpu_custom_call.1} parent=11 // pred_check_branch
          %216 = sbr.rel (%p214) target = $region24
        $region23: #{tpu_custom_call.1} parent=11 // pred_region
          %s218 = ssub.s32 16, 16
          %219 = vsyncadd [#allocation10], %s218
          %222 = dma.hbm_to_smem %s4, 16, [#allocation11], [#allocation10]
        $region24: #{tpu_custom_call.1} parent=11 // pred_fallthru
          _
      $region12: #{tpu_custom_call.1} parent=5 // pred_fallthru
        _
      %p223 = scmp.lt.s32.totalorder %s22, 2
      // Predicated region
      $region25: #{tpu_custom_call.1} parent=5 // pred_check
        %p224 = pneg %p223
      $region26: #{tpu_custom_call.1} parent=5 // pred_check_branch
        %226 = sbr.rel (%p224) target = $region28
      $region27: #{tpu_custom_call.1} parent=5 // pred_region
        // Predicated region
        $region29: #{tpu_custom_call.1} parent=27 // pred_check
          %p227 = pneg %p56
        $region30: #{tpu_custom_call.1} parent=27 // pred_check_branch
          %229 = sbr.rel (%p227) target = $region32
        $region31: #{tpu_custom_call.1} parent=27 // pred_region
          %s230 = sand.u32 %s46, 1
          %s231 = scalar_lea.sflag [#allocation3], %s230
          %s232 = sand.u32 %s46, 1
          %s233 = smul.addr %s232, 64
          %s234 = scalar_lea.vmem [#allocation2], %s233
          %s235 = smul.u32 2, %s30
          %s237 = ssub.s32 1024, 1024
          %238 = vsyncadd %s231, %s237
          %s239 = smul.addr %s29, 8
          %s240 = sadd.s32 %s235, %s239
          %s241 = smul.addr %s240, 128
          %s242 = scalar_lea.hbm %s0, %s241
          %s243 = sshll.u32 %s234, 4
          %s244 = int_to_ptr.vmem [resolvable:$true] %s243
          %249 = dma.hbm_to_vmem [thread:$0]  %s242, 1024, %s244, %s231, 128, 128, 8
        $region32: #{tpu_custom_call.1} parent=27 // pred_fallthru
          _
        // Predicated region
        $region33: #{tpu_custom_call.1} parent=27 // pred_check
          %p250 = pneg %p84
        $region34: #{tpu_custom_call.1} parent=27 // pred_check_branch
          %252 = sbr.rel (%p250) target = $region36
        $region35: #{tpu_custom_call.1} parent=27 // pred_region
          %s253 = sand.u32 %s74, 1
          %s254 = scalar_lea.sflag [#allocation7], %s253
          %s255 = sand.u32 %s74, 1
          %s256 = smul.addr %s255, 8
          %s257 = scalar_lea.vmem [#allocation6], %s256
          %s259 = ssub.s32 128, 128
          %260 = vsyncadd %s254, %s259
          %s261 = smul.addr %s29, 4
          %s262 = sadd.s32 %s30, %s261
          %s263 = smul.addr %s262, 32
          %s264 = scalar_lea.hbm %s1, %s263
          %s265 = sshll.u32 %s257, 4
          %s266 = int_to_ptr.vmem [resolvable:$true] %s265
          %271 = dma.hbm_to_vmem [thread:$0]  %s264, 128, %s266, %s254, 32, 32, 2
        $region36: #{tpu_custom_call.1} parent=27 // pred_fallthru
          _
      $region28: #{tpu_custom_call.1} parent=5 // pred_fallthru
        _
      %p272 = scmp.le.s32.totalorder 1, %s22
      %p273 = scmp.lt.s32.totalorder %s22, 3
      %p274 = pnand %p272, %p273
      %p275 = pneg %p274
      // Predicated region
      $region37: #{tpu_custom_call.1} parent=5 // pred_check
        _
      $region38: #{tpu_custom_call.1} parent=5 // pred_check_branch
        %277 = sbr.rel (%p274) target = $region40
      $region39: #{tpu_custom_call.1} parent=5 // pred_region
        %s278 = ssub.s32 %s22, 1
        %s279 = sand.u32 %s49, 1
        %s280 = scalar_lea.sflag [#allocation3], %s279
        %s281 = sand.u32 %s49, 1
        %s282 = smul.addr %s281, 64
        %s283 = scalar_lea.vmem [#allocation2], %s282
        // Predicated region
        $region41: #{tpu_custom_call.1} parent=39 // pred_check
          %p284 = pneg %p62
        $region42: #{tpu_custom_call.1} parent=39 // pred_check_branch
          %286 = sbr.rel (%p284) target = $region44
        $region43: #{tpu_custom_call.1} parent=39 // pred_region
          %287 = dma.done %s280, 1024
        $region44: #{tpu_custom_call.1} parent=39 // pred_fallthru
          _
        %s288 = sand.u32 %s77, 1
        %s289 = scalar_lea.sflag [#allocation7], %s288
        %s290 = sand.u32 %s77, 1
        %s291 = smul.addr %s290, 8
        %s292 = scalar_lea.vmem [#allocation6], %s291
        // Predicated region
        $region45: #{tpu_custom_call.1} parent=39 // pred_check
          %p293 = pneg %p90
        $region46: #{tpu_custom_call.1} parent=39 // pred_check_branch
          %295 = sbr.rel (%p293) target = $region48
        $region47: #{tpu_custom_call.1} parent=39 // pred_region
          %296 = dma.done %s289, 128
        $region48: #{tpu_custom_call.1} parent=39 // pred_fallthru
          _
        // Predicated region
        $region49: #{tpu_custom_call.1} parent=39 // pred_check
          %p297 = pneg %p111
        $region50: #{tpu_custom_call.1} parent=39 // pred_check_branch
          %299 = sbr.rel (%p297) target = $region52
        $region51: #{tpu_custom_call.1} parent=39 // pred_region
          %300 = dma.done [#allocation5], 32
        $region52: #{tpu_custom_call.1} parent=39 // pred_fallthru
          _
        // Predicated region
        $region53: #{tpu_custom_call.1} parent=39 // pred_check
          %p301 = pneg %p132
        $region54: #{tpu_custom_call.1} parent=39 // pred_check_branch
          %303 = sbr.rel (%p301) target = $region56
        $region55: #{tpu_custom_call.1} parent=39 // pred_region
          %304 = dma.done [#allocation10], 128
        $region56: #{tpu_custom_call.1} parent=39 // pred_fallthru
          _
        // Predicated region
        $region57: #{tpu_custom_call.1} parent=39 // pred_check
          %p305 = pneg %p153
        $region58: #{tpu_custom_call.1} parent=39 // pred_check_branch
          %307 = sbr.rel (%p305) target = $region60
        $region59: #{tpu_custom_call.1} parent=39 // pred_region
          %308 = dma.done [#allocation10], 16
        $region60: #{tpu_custom_call.1} parent=39 // pred_fallthru
          _
        %309 = sfence
        %s310 = sand.u32 %s49, 1
        %s311 = scalar_lea.sflag [#allocation3], %s310
        %s312 = sand.u32 %s49, 1
        %s313 = smul.addr %s312, 64
        %s314 = scalar_lea.vmem [#allocation2], %s313
        %p315 = pneg %p62
        %p316 = pneg %p59
        %s317 = sand.u32 %s77, 1
        %s318 = scalar_lea.sflag [#allocation7], %s317
        %s319 = sand.u32 %s77, 1
        %s320 = smul.addr %s319, 8
        %s321 = scalar_lea.vmem [#allocation6], %s320
        %p322 = pneg %p90
        %p323 = pneg %p87
        %p324 = pneg %p111
        %p325 = pneg %p108
        %p326 = pneg %p132
        %p327 = pneg %p129
        %p328 = pneg %p153
        %p329 = pneg %p150
        %p330 = pneg %p181
        %p331 = pneg %p178
        %s332 = sand.u32 %s168, 1
        %s333 = scalar_lea.sflag [#allocation4], %s332
        %s334 = sand.u32 %s168, 1
        %s335 = smul.addr %s334, 128
        %s336 = scalar_lea.vmem [#allocation12], %s335
        %s337 = smul.u32 2, %s32
        %s338 = smul.u32 2, %s32
        %v339 = vld [vmem:[%s283] sm:$0xff]
        %v340 = vld [vmem:[%s283 + $0x8] sm:$0xff]
        %v341 = vld [vmem:[%s292] sm:$0x1]
        %v342 = vld [vmem:[%s292 + $0x1] sm:$0x1]
        %vm345 = vcmask 1040384
        %v346 = vrot.slane %v339, 7
        %v347 = vrot.slane %v340, 7
        %v348 = vsel %vm345, %v346, %v347
        %v351 = vsel %vm345, %v341, %v346
        %vm352 = vcmask 1046528
        %v353 = vrot.slane %v339, 1
        %v354 = vrot.slane %v340, 1
        %v355 = vsel %vm352, %v353, %v354
        %v359 = vrot.slane %v342, 1
        %v361 = vsel %vm352, %v354, %v359
        %s362 = smul.u32 %s31, 128
        %s363 = sld [smem:[#allocation8 + %s362]]
        %v364 = vstv %s363
        %v365 = vmul.f32 %v351, %v364
        %v366 = vmul.f32 %v348, %v364
        %s367 = sadd.s32 %s362, 3
        %s368 = sld [smem:[#allocation8 + %s367]]
        %v369 = vstv %s368
        %v370 = vmul.f32 %v339, %v369
        %v371 = vmul.f32 %v340, %v369
        %v372 = vadd.f32 %v365, %v370
        %v373 = vadd.f32 %v366, %v371
        %s374 = sadd.s32 %s362, 6
        %s375 = sld [smem:[#allocation8 + %s374]]
        %v376 = vstv %s375
        %v377 = vmul.f32 %v355, %v376
        %v378 = vmul.f32 %v361, %v376
        %v379 = vadd.f32 %v372, %v377
        %v380 = vadd.f32 %v373, %v378
        %s381 = sadd.s32 %s362, 1
        %s382 = sld [smem:[#allocation8 + %s381]]
        %v383 = vstv %s382
        %v384 = vmul.f32 %v351, %v383
        %v385 = vmul.f32 %v348, %v383
        %s386 = sadd.s32 %s362, 4
        %s387 = sld [smem:[#allocation8 + %s386]]
        %v388 = vstv %s387
        %v389 = vmul.f32 %v339, %v388
        %v390 = vmul.f32 %v340, %v388
        %v391 = vadd.f32 %v384, %v389
        %v392 = vadd.f32 %v385, %v390
        %s393 = sadd.s32 %s362, 7
        %s394 = sld [smem:[#allocation8 + %s393]]
        %v395 = vstv %s394
        %v396 = vmul.f32 %v355, %v395
        %v397 = vmul.f32 %v361, %v395
        %v398 = vadd.f32 %v391, %v396
        %v399 = vadd.f32 %v392, %v397
        %s400 = sadd.s32 %s362, 2
        %s401 = sld [smem:[#allocation8 + %s400]]
        %v402 = vstv %s401
        %v403 = vmul.f32 %v351, %v402
        %v404 = vmul.f32 %v348, %v402
        %s405 = sadd.s32 %s362, 5
        %s406 = sld [smem:[#allocation8 + %s405]]
        %v407 = vstv %s406
        %v408 = vmul.f32 %v339, %v407
        %v409 = vmul.f32 %v340, %v407
        %v410 = vadd.f32 %v403, %v408
        %v411 = vadd.f32 %v404, %v409
        %s412 = sadd.s32 %s362, 8
        %s413 = sld [smem:[#allocation8 + %s412]]
        %v414 = vstv %s413
        %v415 = vmul.f32 %v355, %v414
        %v416 = vmul.f32 %v361, %v414
        %v417 = vadd.f32 %v410, %v415
        %v418 = vadd.f32 %v411, %v416
        %421 = vrot.lane.b32.xlu0 %v379, 1
        %v422 = vpop.permute.xlu0 %421
        %423 = vrot.lane.b32.xlu0 %v380, 1
        %v424 = vpop.permute.xlu0 %423
        %vm427 = vcmask 7168
        %v428 = vsel %vm427, 0.0, %v422
        %v429 = vsel %vm427, 0.0, %v424
        %v430 = vadd.f32 %v398, %v428
        %v431 = vadd.f32 %v399, %v429
        %434 = vrot.lane.b32.xlu0 %v417, 127
        %v435 = vpop.permute.xlu0 %434
        %436 = vrot.lane.b32.xlu0 %v418, 127
        %v437 = vpop.permute.xlu0 %436
        %vm440 = vcmask 121856
        %v441 = vsel %vm440, %v435, 0.0
        %v442 = vsel %vm440, %v437, 0.0
        %v443 = vadd.f32 %v430, %v441
        %v444 = vadd.f32 %v431, %v442
        %s445 = sld [smem:[#allocation9]]
        %v446 = vstv %s445
        %v447 = vmul.f32 %v443, %v446
        %v448 = vmul.f32 %v444, %v446
        %s449 = sld [smem:[#allocation9 + $0x80]]
        %v450 = vstv %s449
        %v451 = vmul.f32 %v443, %v450
        %v452 = vmul.f32 %v444, %v450
        %s453 = sld [smem:[#allocation9 + $0x100]]
        %v454 = vstv %s453
        %v455 = vmul.f32 %v443, %v454
        %v456 = vmul.f32 %v444, %v454
        %s457 = sld [smem:[#allocation9 + $0x180]]
        %v458 = vstv %s457
        %v459 = vmul.f32 %v443, %v458
        %v460 = vmul.f32 %v444, %v458
        %s461 = sld [smem:[#allocation9 + $0x200]]
        %v462 = vstv %s461
        %v463 = vmul.f32 %v443, %v462
        %v464 = vmul.f32 %v444, %v462
        %s465 = sld [smem:[#allocation9 + $0x280]]
        %v466 = vstv %s465
        %v467 = vmul.f32 %v443, %v466
        %v468 = vmul.f32 %v444, %v466
        %s469 = sld [smem:[#allocation9 + $0x300]]
        %v470 = vstv %s469
        %v471 = vmul.f32 %v443, %v470
        %v472 = vmul.f32 %v444, %v470
        %s473 = sld [smem:[#allocation9 + $0x380]]
        %v474 = vstv %s473
        %v475 = vmul.f32 %v443, %v474
        %v476 = vmul.f32 %v444, %v474
        %s477 = scalar_lea.vmem %s283, 16 [#allocation2]
        %v478 = vld [vmem:[%s477] sm:$0xff]
        %v479 = vld [vmem:[%s477 + $0x8] sm:$0xff]
        %s480 = scalar_lea.vmem %s292, 2 [#allocation6]
        %v481 = vld [vmem:[%s480] sm:$0x1]
        %v482 = vld [vmem:[%s480 + $0x1] sm:$0x1]
        %v485 = vrot.slane %v478, 7
        %v486 = vrot.slane %v479, 7
        %v487 = vsel %vm345, %v485, %v486
        %v490 = vsel %vm345, %v481, %v485
        %v491 = vrot.slane %v478, 1
        %v492 = vrot.slane %v479, 1
        %v493 = vsel %vm352, %v491, %v492
        %v497 = vrot.slane %v482, 1
        %v499 = vsel %vm352, %v492, %v497
        %s500 = sadd.s32 %s362, 9
        %s501 = sld [smem:[#allocation8 + %s500]]
        %v502 = vstv %s501
        %v503 = vmul.f32 %v490, %v502
        %v504 = vmul.f32 %v487, %v502
        %s505 = sadd.s32 %s362, 12
        %s506 = sld [smem:[#allocation8 + %s505]]
        %v507 = vstv %s506
        %v508 = vmul.f32 %v478, %v507
        %v509 = vmul.f32 %v479, %v507
        %v510 = vadd.f32 %v503, %v508
        %v511 = vadd.f32 %v504, %v509
        %s512 = sadd.s32 %s362, 15
        %s513 = sld [smem:[#allocation8 + %s512]]
        %v514 = vstv %s513
        %v515 = vmul.f32 %v493, %v514
        %v516 = vmul.f32 %v499, %v514
        %v517 = vadd.f32 %v510, %v515
        %v518 = vadd.f32 %v511, %v516
        %s519 = sadd.s32 %s362, 10
        %s520 = sld [smem:[#allocation8 + %s519]]
        %v521 = vstv %s520
        %v522 = vmul.f32 %v490, %v521
        %v523 = vmul.f32 %v487, %v521
        %s524 = sadd.s32 %s362, 13
        %s525 = sld [smem:[#allocation8 + %s524]]
        %v526 = vstv %s525
        %v527 = vmul.f32 %v478, %v526
        %v528 = vmul.f32 %v479, %v526
        %v529 = vadd.f32 %v522, %v527
        %v530 = vadd.f32 %v523, %v528
        %s531 = sadd.s32 %s362, 16
        %s532 = sld [smem:[#allocation8 + %s531]]
        %v533 = vstv %s532
        %v534 = vmul.f32 %v493, %v533
        %v535 = vmul.f32 %v499, %v533
        %v536 = vadd.f32 %v529, %v534
        %v537 = vadd.f32 %v530, %v535
        %s538 = sadd.s32 %s362, 11
        %s539 = sld [smem:[#allocation8 + %s538]]
        %v540 = vstv %s539
        %v541 = vmul.f32 %v490, %v540
        %v542 = vmul.f32 %v487, %v540
        %s543 = sadd.s32 %s362, 14
        %s544 = sld [smem:[#allocation8 + %s543]]
        %v545 = vstv %s544
        %v546 = vmul.f32 %v478, %v545
        %v547 = vmul.f32 %v479, %v545
        %v548 = vadd.f32 %v541, %v546
        %v549 = vadd.f32 %v542, %v547
        %s550 = sadd.s32 %s362, 17
        %s551 = sld [smem:[#allocation8 + %s550]]
        %v552 = vstv %s551
        %v553 = vmul.f32 %v493, %v552
        %v554 = vmul.f32 %v499, %v552
        %v555 = vadd.f32 %v548, %v553
        %v556 = vadd.f32 %v549, %v554
        %559 = vrot.lane.b32.xlu0 %v517, 1
        %v560 = vpop.permute.xlu0 %559
        %561 = vrot.lane.b32.xlu0 %v518, 1
        %v562 = vpop.permute.xlu0 %561
        %v565 = vsel %vm427, 0.0, %v560
        %v566 = vsel %vm427, 0.0, %v562
        %v567 = vadd.f32 %v536, %v565
        %v568 = vadd.f32 %v537, %v566
        %571 = vrot.lane.b32.xlu0 %v555, 127
        %v572 = vpop.permute.xlu0 %571
        %573 = vrot.lane.b32.xlu0 %v556, 127
        %v574 = vpop.permute.xlu0 %573
        %v577 = vsel %vm440, %v572, 0.0
        %v578 = vsel %vm440, %v574, 0.0
        %v579 = vadd.f32 %v567, %v577
        %v580 = vadd.f32 %v568, %v578
        %s581 = sld [smem:[#allocation9 + $0x1]]
        %v582 = vstv %s581
        %v583 = vmul.f32 %v579, %v582
        %v584 = vmul.f32 %v580, %v582
        %v585 = vadd.f32 %v447, %v583
        %v586 = vadd.f32 %v448, %v584
        %s587 = sld [smem:[#allocation9 + $0x81]]
        %v588 = vstv %s587
        %v589 = vmul.f32 %v579, %v588
        %v590 = vmul.f32 %v580, %v588
        %v591 = vadd.f32 %v451, %v589
        %v592 = vadd.f32 %v452, %v590
        %s593 = sld [smem:[#allocation9 + $0x101]]
        %v594 = vstv %s593
        %v595 = vmul.f32 %v579, %v594
        %v596 = vmul.f32 %v580, %v594
        %v597 = vadd.f32 %v455, %v595
        %v598 = vadd.f32 %v456, %v596
        %s599 = sld [smem:[#allocation9 + $0x181]]
        %v600 = vstv %s599
        %v601 = vmul.f32 %v579, %v600
        %v602 = vmul.f32 %v580, %v600
        %v603 = vadd.f32 %v459, %v601
        %v604 = vadd.f32 %v460, %v602
        %s605 = sld [smem:[#allocation9 + $0x201]]
        %v606 = vstv %s605
        %v607 = vmul.f32 %v579, %v606
        %v608 = vmul.f32 %v580, %v606
        %v609 = vadd.f32 %v463, %v607
        %v610 = vadd.f32 %v464, %v608
        %s611 = sld [smem:[#allocation9 + $0x281]]
        %v612 = vstv %s611
        %v613 = vmul.f32 %v579, %v612
        %v614 = vmul.f32 %v580, %v612
        %v615 = vadd.f32 %v467, %v613
        %v616 = vadd.f32 %v468, %v614
        %s617 = sld [smem:[#allocation9 + $0x301]]
        %v618 = vstv %s617
        %v619 = vmul.f32 %v579, %v618
        %v620 = vmul.f32 %v580, %v618
        %v621 = vadd.f32 %v471, %v619
        %v622 = vadd.f32 %v472, %v620
        %s623 = sld [smem:[#allocation9 + $0x381]]
        %v624 = vstv %s623
        %v625 = vmul.f32 %v579, %v624
        %v626 = vmul.f32 %v580, %v624
        %v627 = vadd.f32 %v475, %v625
        %v628 = vadd.f32 %v476, %v626
        %s629 = scalar_lea.vmem %s283, 32 [#allocation2]
        %v630 = vld [vmem:[%s629] sm:$0xff]
        %v631 = vld [vmem:[%s629 + $0x8] sm:$0xff]
        %s632 = scalar_lea.vmem %s292, 4 [#allocation6]
        %v633 = vld [vmem:[%s632] sm:$0x1]
        %v634 = vld [vmem:[%s632 + $0x1] sm:$0x1]
        %v637 = vrot.slane %v630, 7
        %v638 = vrot.slane %v631, 7
        %v639 = vsel %vm345, %v637, %v638
        %v642 = vsel %vm345, %v633, %v637
        %v643 = vrot.slane %v630, 1
        %v644 = vrot.slane %v631, 1
        %v645 = vsel %vm352, %v643, %v644
        %v649 = vrot.slane %v634, 1
        %v651 = vsel %vm352, %v644, %v649
        %s652 = sadd.s32 %s362, 18
        %s653 = sld [smem:[#allocation8 + %s652]]
        %v654 = vstv %s653
        %v655 = vmul.f32 %v642, %v654
        %v656 = vmul.f32 %v639, %v654
        %s657 = sadd.s32 %s362, 21
        %s658 = sld [smem:[#allocation8 + %s657]]
        %v659 = vstv %s658
        %v660 = vmul.f32 %v630, %v659
        %v661 = vmul.f32 %v631, %v659
        %v662 = vadd.f32 %v655, %v660
        %v663 = vadd.f32 %v656, %v661
        %s664 = sadd.s32 %s362, 24
        %s665 = sld [smem:[#allocation8 + %s664]]
        %v666 = vstv %s665
        %v667 = vmul.f32 %v645, %v666
        %v668 = vmul.f32 %v651, %v666
        %v669 = vadd.f32 %v662, %v667
        %v670 = vadd.f32 %v663, %v668
        %s671 = sadd.s32 %s362, 19
        %s672 = sld [smem:[#allocation8 + %s671]]
        %v673 = vstv %s672
        %v674 = vmul.f32 %v642, %v673
        %v675 = vmul.f32 %v639, %v673
        %s676 = sadd.s32 %s362, 22
        %s677 = sld [smem:[#allocation8 + %s676]]
        %v678 = vstv %s677
        %v679 = vmul.f32 %v630, %v678
        %v680 = vmul.f32 %v631, %v678
        %v681 = vadd.f32 %v674, %v679
        %v682 = vadd.f32 %v675, %v680
        %s683 = sadd.s32 %s362, 25
        %s684 = sld [smem:[#allocation8 + %s683]]
        %v685 = vstv %s684
        %v686 = vmul.f32 %v645, %v685
        %v687 = vmul.f32 %v651, %v685
        %v688 = vadd.f32 %v681, %v686
        %v689 = vadd.f32 %v682, %v687
        %s690 = sadd.s32 %s362, 20
        %s691 = sld [smem:[#allocation8 + %s690]]
        %v692 = vstv %s691
        %v693 = vmul.f32 %v642, %v692
        %v694 = vmul.f32 %v639, %v692
        %s695 = sadd.s32 %s362, 23
        %s696 = sld [smem:[#allocation8 + %s695]]
        %v697 = vstv %s696
        %v698 = vmul.f32 %v630, %v697
        %v699 = vmul.f32 %v631, %v697
        %v700 = vadd.f32 %v693, %v698
        %v701 = vadd.f32 %v694, %v699
        %s702 = sadd.s32 %s362, 26
        %s703 = sld [smem:[#allocation8 + %s702]]
        %v704 = vstv %s703
        %v705 = vmul.f32 %v645, %v704
        %v706 = vmul.f32 %v651, %v704
        %v707 = vadd.f32 %v700, %v705
        %v708 = vadd.f32 %v701, %v706
        %711 = vrot.lane.b32.xlu0 %v669, 1
        %v712 = vpop.permute.xlu0 %711
        %713 = vrot.lane.b32.xlu0 %v670, 1
        %v714 = vpop.permute.xlu0 %713
        %v717 = vsel %vm427, 0.0, %v712
        %v718 = vsel %vm427, 0.0, %v714
        %v719 = vadd.f32 %v688, %v717
        %v720 = vadd.f32 %v689, %v718
        %723 = vrot.lane.b32.xlu0 %v707, 127
        %v724 = vpop.permute.xlu0 %723
        %725 = vrot.lane.b32.xlu0 %v708, 127
        %v726 = vpop.permute.xlu0 %725
        %v729 = vsel %vm440, %v724, 0.0
        %v730 = vsel %vm440, %v726, 0.0
        %v731 = vadd.f32 %v719, %v729
        %v732 = vadd.f32 %v720, %v730
        %s733 = sld [smem:[#allocation9 + $0x2]]
        %v734 = vstv %s733
        %v735 = vmul.f32 %v731, %v734
        %v736 = vmul.f32 %v732, %v734
        %v737 = vadd.f32 %v585, %v735
        %v738 = vadd.f32 %v586, %v736
        %s739 = sld [smem:[#allocation9 + $0x82]]
        %v740 = vstv %s739
        %v741 = vmul.f32 %v731, %v740
        %v742 = vmul.f32 %v732, %v740
        %v743 = vadd.f32 %v591, %v741
        %v744 = vadd.f32 %v592, %v742
        %s745 = sld [smem:[#allocation9 + $0x102]]
        %v746 = vstv %s745
        %v747 = vmul.f32 %v731, %v746
        %v748 = vmul.f32 %v732, %v746
        %v749 = vadd.f32 %v597, %v747
        %v750 = vadd.f32 %v598, %v748
        %s751 = sld [smem:[#allocation9 + $0x182]]
        %v752 = vstv %s751
        %v753 = vmul.f32 %v731, %v752
        %v754 = vmul.f32 %v732, %v752
        %v755 = vadd.f32 %v603, %v753
        %v756 = vadd.f32 %v604, %v754
        %s757 = sld [smem:[#allocation9 + $0x202]]
        %v758 = vstv %s757
        %v759 = vmul.f32 %v731, %v758
        %v760 = vmul.f32 %v732, %v758
        %v761 = vadd.f32 %v609, %v759
        %v762 = vadd.f32 %v610, %v760
        %s763 = sld [smem:[#allocation9 + $0x282]]
        %v764 = vstv %s763
        %v765 = vmul.f32 %v731, %v764
        %v766 = vmul.f32 %v732, %v764
        %v767 = vadd.f32 %v615, %v765
        %v768 = vadd.f32 %v616, %v766
        %s769 = sld [smem:[#allocation9 + $0x302]]
        %v770 = vstv %s769
        %v771 = vmul.f32 %v731, %v770
        %v772 = vmul.f32 %v732, %v770
        %v773 = vadd.f32 %v621, %v771
        %v774 = vadd.f32 %v622, %v772
        %s775 = sld [smem:[#allocation9 + $0x382]]
        %v776 = vstv %s775
        %v777 = vmul.f32 %v731, %v776
        %v778 = vmul.f32 %v732, %v776
        %v779 = vadd.f32 %v627, %v777
        %v780 = vadd.f32 %v628, %v778
        %s781 = scalar_lea.vmem %s283, 48 [#allocation2]
        %v782 = vld [vmem:[%s781] sm:$0xff]
        %v783 = vld [vmem:[%s781 + $0x8] sm:$0xff]
        %s784 = scalar_lea.vmem %s292, 6 [#allocation6]
        %v785 = vld [vmem:[%s784] sm:$0x1]
        %v786 = vld [vmem:[%s784 + $0x1] sm:$0x1]
        %v789 = vrot.slane %v782, 7
        %v790 = vrot.slane %v783, 7
        %v791 = vsel %vm345, %v789, %v790
        %v794 = vsel %vm345, %v785, %v789
        %v795 = vrot.slane %v782, 1
        %v796 = vrot.slane %v783, 1
        %v797 = vsel %vm352, %v795, %v796
        %v801 = vrot.slane %v786, 1
        %v803 = vsel %vm352, %v796, %v801
        %s804 = sadd.s32 %s362, 27
        %s805 = sld [smem:[#allocation8 + %s804]]
        %v806 = vstv %s805
        %v807 = vmul.f32 %v794, %v806
        %v808 = vmul.f32 %v791, %v806
        %s809 = sadd.s32 %s362, 30
        %s810 = sld [smem:[#allocation8 + %s809]]
        %v811 = vstv %s810
        %v812 = vmul.f32 %v782, %v811
        %v813 = vmul.f32 %v783, %v811
        %v814 = vadd.f32 %v807, %v812
        %v815 = vadd.f32 %v808, %v813
        %s816 = sadd.s32 %s362, 33
        %s817 = sld [smem:[#allocation8 + %s816]]
        %v818 = vstv %s817
        %v819 = vmul.f32 %v797, %v818
        %v820 = vmul.f32 %v803, %v818
        %v821 = vadd.f32 %v814, %v819
        %v822 = vadd.f32 %v815, %v820
        %s823 = sadd.s32 %s362, 28
        %s824 = sld [smem:[#allocation8 + %s823]]
        %v825 = vstv %s824
        %v826 = vmul.f32 %v794, %v825
        %v827 = vmul.f32 %v791, %v825
        %s828 = sadd.s32 %s362, 31
        %s829 = sld [smem:[#allocation8 + %s828]]
        %v830 = vstv %s829
        %v831 = vmul.f32 %v782, %v830
        %v832 = vmul.f32 %v783, %v830
        %v833 = vadd.f32 %v826, %v831
        %v834 = vadd.f32 %v827, %v832
        %s835 = sadd.s32 %s362, 34
        %s836 = sld [smem:[#allocation8 + %s835]]
        %v837 = vstv %s836
        %v838 = vmul.f32 %v797, %v837
        %v839 = vmul.f32 %v803, %v837
        %v840 = vadd.f32 %v833, %v838
        %v841 = vadd.f32 %v834, %v839
        %s842 = sadd.s32 %s362, 29
        %s843 = sld [smem:[#allocation8 + %s842]]
        %v844 = vstv %s843
        %v845 = vmul.f32 %v794, %v844
        %v846 = vmul.f32 %v791, %v844
        %s847 = sadd.s32 %s362, 32
        %s848 = sld [smem:[#allocation8 + %s847]]
        %v849 = vstv %s848
        %v850 = vmul.f32 %v782, %v849
        %v851 = vmul.f32 %v783, %v849
        %v852 = vadd.f32 %v845, %v850
        %v853 = vadd.f32 %v846, %v851
        %s854 = sadd.s32 %s362, 35
        %s855 = sld [smem:[#allocation8 + %s854]]
        %v856 = vstv %s855
        %v857 = vmul.f32 %v797, %v856
        %v858 = vmul.f32 %v803, %v856
        %v859 = vadd.f32 %v852, %v857
        %v860 = vadd.f32 %v853, %v858
        %863 = vrot.lane.b32.xlu0 %v821, 1
        %v864 = vpop.permute.xlu0 %863
        %865 = vrot.lane.b32.xlu0 %v822, 1
        %v866 = vpop.permute.xlu0 %865
        %v869 = vsel %vm427, 0.0, %v864
        %v870 = vsel %vm427, 0.0, %v866
        %v871 = vadd.f32 %v840, %v869
        %v872 = vadd.f32 %v841, %v870
        %875 = vrot.lane.b32.xlu0 %v859, 127
        %v876 = vpop.permute.xlu0 %875
        %877 = vrot.lane.b32.xlu0 %v860, 127
        %v878 = vpop.permute.xlu0 %877
        %v881 = vsel %vm440, %v876, 0.0
        %v882 = vsel %vm440, %v878, 0.0
        %v883 = vadd.f32 %v871, %v881
        %v884 = vadd.f32 %v872, %v882
        %s885 = sld [smem:[#allocation9 + $0x3]]
        %v886 = vstv %s885
        %v887 = vmul.f32 %v883, %v886
        %v888 = vmul.f32 %v884, %v886
        %v889 = vadd.f32 %v737, %v887
        %v890 = vadd.f32 %v738, %v888
        %s891 = sld [smem:[#allocation9 + $0x83]]
        %v892 = vstv %s891
        %v893 = vmul.f32 %v883, %v892
        %v894 = vmul.f32 %v884, %v892
        %v895 = vadd.f32 %v743, %v893
        %v896 = vadd.f32 %v744, %v894
        %s897 = sld [smem:[#allocation9 + $0x103]]
        %v898 = vstv %s897
        %v899 = vmul.f32 %v883, %v898
        %v900 = vmul.f32 %v884, %v898
        %v901 = vadd.f32 %v749, %v899
        %v902 = vadd.f32 %v750, %v900
        %s903 = sld [smem:[#allocation9 + $0x183]]
        %v904 = vstv %s903
        %v905 = vmul.f32 %v883, %v904
        %v906 = vmul.f32 %v884, %v904
        %v907 = vadd.f32 %v755, %v905
        %v908 = vadd.f32 %v756, %v906
        %s909 = sld [smem:[#allocation9 + $0x203]]
        %v910 = vstv %s909
        %v911 = vmul.f32 %v883, %v910
        %v912 = vmul.f32 %v884, %v910
        %v913 = vadd.f32 %v761, %v911
        %v914 = vadd.f32 %v762, %v912
        %s915 = sld [smem:[#allocation9 + $0x283]]
        %v916 = vstv %s915
        %v917 = vmul.f32 %v883, %v916
        %v918 = vmul.f32 %v884, %v916
        %v919 = vadd.f32 %v767, %v917
        %v920 = vadd.f32 %v768, %v918
        %s921 = sld [smem:[#allocation9 + $0x303]]
        %v922 = vstv %s921
        %v923 = vmul.f32 %v883, %v922
        %v924 = vmul.f32 %v884, %v922
        %v925 = vadd.f32 %v773, %v923
        %v926 = vadd.f32 %v774, %v924
        %s927 = sld [smem:[#allocation9 + $0x383]]
        %v928 = vstv %s927
        %v929 = vmul.f32 %v883, %v928
        %v930 = vmul.f32 %v884, %v928
        %v931 = vadd.f32 %v779, %v929
        %v932 = vadd.f32 %v780, %v930
        %s933 = sld [smem:[#allocation11]]
        %v934 = vstv %s933
        %v935 = vadd.f32 %v889, %v934
        %v936 = vadd.f32 %v890, %v934
        %vm937 = vcmask 130048
        %938 = vst.msk [vmem:[%s336] sm:$0xff] %vm937, %v935
        %939 = vst.msk [vmem:[%s336 + $0x8] sm:$0xff] %vm937, %v936
        %s940 = sld [smem:[#allocation11 + $0x1]]
        %v941 = vstv %s940
        %v942 = vadd.f32 %v895, %v941
        %v943 = vadd.f32 %v896, %v941
        %s944 = scalar_lea.vmem %s336, 16 [#allocation12]
        %945 = vst.msk [vmem:[%s944] sm:$0xff] %vm937, %v942
        %946 = vst.msk [vmem:[%s944 + $0x8] sm:$0xff] %vm937, %v943
        %s947 = sld [smem:[#allocation11 + $0x2]]
        %v948 = vstv %s947
        %v949 = vadd.f32 %v901, %v948
        %v950 = vadd.f32 %v902, %v948
        %s951 = scalar_lea.vmem %s336, 32 [#allocation12]
        %952 = vst.msk [vmem:[%s951] sm:$0xff] %vm937, %v949
        %953 = vst.msk [vmem:[%s951 + $0x8] sm:$0xff] %vm937, %v950
        %s954 = sld [smem:[#allocation11 + $0x3]]
        %v955 = vstv %s954
        %v956 = vadd.f32 %v907, %v955
        %v957 = vadd.f32 %v908, %v955
        %s958 = scalar_lea.vmem %s336, 48 [#allocation12]
        %959 = vst.msk [vmem:[%s958] sm:$0xff] %vm937, %v956
        %960 = vst.msk [vmem:[%s958 + $0x8] sm:$0xff] %vm937, %v957
        %s961 = sld [smem:[#allocation11 + $0x4]]
        %v962 = vstv %s961
        %v963 = vadd.f32 %v913, %v962
        %v964 = vadd.f32 %v914, %v962
        %s965 = scalar_lea.vmem %s336, 64 [#allocation12]
        %966 = vst.msk [vmem:[%s965] sm:$0xff] %vm937, %v963
        %967 = vst.msk [vmem:[%s965 + $0x8] sm:$0xff] %vm937, %v964
        %s968 = sld [smem:[#allocation11 + $0x5]]
        %v969 = vstv %s968
        %v970 = vadd.f32 %v919, %v969
        %v971 = vadd.f32 %v920, %v969
        %s972 = scalar_lea.vmem %s336, 80 [#allocation12]
        %973 = vst.msk [vmem:[%s972] sm:$0xff] %vm937, %v970
        %974 = vst.msk [vmem:[%s972 + $0x8] sm:$0xff] %vm937, %v971
        %s975 = sld [smem:[#allocation11 + $0x6]]
        %v976 = vstv %s975
        %v977 = vadd.f32 %v925, %v976
        %v978 = vadd.f32 %v926, %v976
        %s979 = scalar_lea.vmem %s336, 96 [#allocation12]
        %980 = vst.msk [vmem:[%s979] sm:$0xff] %vm937, %v977
        %981 = vst.msk [vmem:[%s979 + $0x8] sm:$0xff] %vm937, %v978
        %s982 = sld [smem:[#allocation11 + $0x7]]
        %v983 = vstv %s982
        %v984 = vadd.f32 %v931, %v983
        %v985 = vadd.f32 %v932, %v983
        %s986 = scalar_lea.vmem %s336, 112 [#allocation12]
        %987 = vst.msk [vmem:[%s986] sm:$0xff] %vm937, %v984
        %988 = vst.msk [vmem:[%s986 + $0x8] sm:$0xff] %vm937, %v985
        %s989 = sand.u32 %s168, 1
        %s990 = scalar_lea.sflag [#allocation4], %s989
        %s991 = sand.u32 %s168, 1
        %s992 = smul.addr %s991, 128
        %s993 = scalar_lea.vmem [#allocation12], %s992
        // Predicated region
        $region61: #{tpu_custom_call.1} parent=39 // pred_check
          %p994 = pneg %p178
        $region62: #{tpu_custom_call.1} parent=39 // pred_check_branch
          %996 = sbr.rel (%p994) target = $region64
        $region63: #{tpu_custom_call.1} parent=39 // pred_region
          %s997 = smul.u32 2, %s32
          %s999 = ssub.s32 2048, 2048
          %1000 = vsyncadd %s990, %s999
          %s1001 = smul.addr %s31, 16
          %s1002 = sadd.s32 %s997, %s1001
          %s1003 = smul.addr %s1002, 128
          %s1004 = scalar_lea.hbm %s5, %s1003
          %s1005 = sshll.u32 %s993, 4
          %s1006 = int_to_ptr.vmem [resolvable:$true] %s1005
          %1011 = dma.vmem_to_hbm [thread:$0]  %s1006, 2048, %s1004, %s990, 128, 128, 8
        $region64: #{tpu_custom_call.1} parent=39 // pred_fallthru
          _
      $region40: #{tpu_custom_call.1} parent=5 // pred_fallthru
        _
      %p1012 = scmp.le.s32.totalorder 2, %s22
      // Predicated region
      $region65: #{tpu_custom_call.1} parent=5 // pred_check
        %p1013 = pneg %p1012
      $region66: #{tpu_custom_call.1} parent=5 // pred_check_branch
        %1015 = sbr.rel (%p1013) target = $region68
      $region67: #{tpu_custom_call.1} parent=5 // pred_region
        %s1016 = ssub.s32 %s22, 2
        // Predicated region
        $region69: #{tpu_custom_call.1} parent=67 // pred_check
          %p1017 = pneg %p184
        $region70: #{tpu_custom_call.1} parent=67 // pred_check_branch
          %1019 = sbr.rel (%p1017) target = $region72
        $region71: #{tpu_custom_call.1} parent=67 // pred_region
          %s1020 = sand.u32 %s169, 1
          %s1021 = scalar_lea.sflag [#allocation4], %s1020
          %s1022 = sand.u32 %s169, 1
          %s1023 = smul.addr %s1022, 128
          %s1024 = scalar_lea.vmem [#allocation12], %s1023
          %1025 = dma.done %s1021, 2048
        $region72: #{tpu_custom_call.1} parent=67 // pred_fallthru
          _
      $region68: #{tpu_custom_call.1} parent=5 // pred_fallthru
        _
    $region6: #{tpu_custom_call.1} parent=1 // loop_footer
      %s26 = sadd.s32 1, %s22
    $region7: #{tpu_custom_call.1} parent=1 // loop_footer_branch
      %21 = sbr.rel target = $region3
    $region8: #{tpu_custom_call.1} parent=1 // loop_exit
      _
    %1026 = vsyncpa [#allocation3], 1
    %s1027 = scalar_lea.sflag [#allocation3], 1
    %1028 = vsyncpa %s1027, 1
    %1029 = vsyncpa [#allocation7], 1
    %s1030 = scalar_lea.sflag [#allocation7], 1
    %1031 = vsyncpa %s1030, 1
    %1032 = vsyncpa [#allocation4], 1
    %s1033 = scalar_lea.sflag [#allocation4], 1
    %1034 = vsyncpa %s1033, 1
    %1035 = vsyncpa [#allocation5], 1
    %s1036 = scalar_lea.sflag [#allocation5], 1
    %1037 = vsyncpa %s1036, 1
    %1038 = vsyncpa [#allocation10], 1

</llo_original>
